<compile_context>
chip_gen: v5e
topology: v5e:2x2
jax: 0.10.0
libtpu: 0.0.40
codegen_flags: <defaults>
</compile_context>

<pallas_src>
import jax
import jax.numpy as jnp
from jax.experimental import pallas as pl
from jax.experimental.pallas import tpu as pltpu

EPS = 1e-5


def _round_up(x, m):
    return ((x + m - 1) // m) * m


def _vmem_limit_bytes():
    # v5e/v6e: 128 MiB physical VMEM (raise the small scoped default);
    # v7x: 64 MiB physical (leave headroom for double buffering).
    try:
        cap = int(pltpu.get_tpu_info().vmem_capacity_bytes)
    except Exception:
        cap = 128 * 1024 * 1024
    return max(32 * 1024 * 1024, min(cap * 3 // 4, 96 * 1024 * 1024))


# ----------------------------- Pallas kernels --------------------------------
def _conv_relu_stats_kernel(xp_ref, scale_ref, shift_ref, w_ref, b_ref,
                            y_ref, sum_ref, ssq_ref, pad_scr):
    """One zero-haloed NHWC image per grid step:
         rows = pad(interior(x) * scale + shift)   (incoming BN affine; identity
                                                     scale/shift for the first conv)
         y    = relu(conv3x3(rows) + b)            (3 accumulated MXU matmuls)
       Emits y re-padded in bf16 plus per-image BatchNorm partial statistics."""
    _, hp2, wp2, cin = xp_ref.shape
    h, w = hp2 - 2, wp2 - 2
    kg = w_ref.shape[0] // 3          # per-ky contraction width (3*Cin rounded up)
    cpad = w_ref.shape[1]             # MXU lane width (Cout rounded up to 128)
    cout = b_ref.shape[1]             # true output channels

    # Incoming affine on the interior only; the conv zero-halo must stay exactly
    # zero, so rebuild the padded block in VMEM scratch instead of touching it.
    inter = (xp_ref[0, 1:h + 1, 1:w + 1, :].astype(jnp.float32)
             * scale_ref[...] + shift_ref[...])
    pad_scr[...] = jnp.zeros_like(pad_scr)
    pad_scr[1:h + 1, 1:w + 1, :] = inter.astype(pad_scr.dtype)
    rows = pad_scr[...]                                       # (H+2, W+2, Cin) bf16

    # 3x3 conv: one matmul per ky tap row (K = 3*Cin, no 128-wide K zero padding),
    # f32 accumulation on the MXU.
    acc = jnp.zeros((h * w, cpad), jnp.float32)
    fill = kg - 3 * cin
    for ky in range(3):
        slab = rows[ky:ky + h]                                # (H, W+2, Cin)
        taps = [slab[:, kx:kx + w, :] for kx in range(3)]     # kx = 0, 1, 2
        if fill:
            taps.append(jnp.zeros((h, w, fill), rows.dtype))
        patch = jnp.concatenate(taps, axis=-1).reshape(h * w, kg)
        acc += jnp.dot(patch, w_ref[ky * kg:(ky + 1) * kg, :],
                       preferred_element_type=jnp.float32)

    y = jnp.maximum(acc[:, :cout] + b_ref[...], 0.0)          # bias + ReLU, f32

    # Per-image BatchNorm partials from the f32 accumulator (before the bf16
    # downcast): channel sum and *tile-centered* sum of squares, merged
    # Welford-style outside -> no E[x^2]-mean^2 cancellation.  Broadcast over 8
    # sublanes so the stat output blocks are (8, C)-shaped.
    s = jnp.sum(y, axis=0, keepdims=True)
    m = s * (1.0 / (h * w))
    q = jnp.sum((y - m) ** 2, axis=0, keepdims=True)
    zeros8 = jnp.zeros((8, cout), jnp.float32)
    sum_ref[...] = zeros8 + s
    ssq_ref[...] = zeros8 + q

    # Store the activation in bf16, re-padded with a zero halo, so the next conv
    # (or the final affine pass) reads it directly -- no XLA pad / slab copies.
    y_ref[...] = jnp.zeros_like(y_ref)
    y_ref[0, 1:h + 1, 1:w + 1, :] = y.reshape(h, w, cout).astype(y_ref.dtype)


def _bn_affine_kernel(zp_ref, scale_ref, shift_ref, o_ref):
    """Final BatchNorm affine: read the zero-haloed bf16 activation, apply
    y*scale + shift to the interior and emit the unpadded f32 NHWC image."""
    _, hp2, wp2, c = zp_ref.shape
    h, w = hp2 - 2, wp2 - 2
    z = zp_ref[0, 1:h + 1, 1:w + 1, :].astype(jnp.float32)
    o_ref[...] = (z * scale_ref[...] + shift_ref[...]
                  ).reshape(1, h, w, c).astype(o_ref.dtype)


# ------------------------------ pallas_call wrappers --------------------------
def _conv_relu_stats(xp, scale, shift, wcol, bias):
    n, hp2, wp2, cin = xp.shape
    h, w = hp2 - 2, wp2 - 2
    kg3, cpad = wcol.shape
    cout = bias.shape[1]

    flops = 2 * n * h * w * kg3 * cpad
    bytes_accessed = (xp.size * 2 + wcol.size * 2 + bias.size * 4
                      + n * hp2 * wp2 * cout * 2 + 2 * n * 8 * cout * 4)

    return pl.pallas_call(
        _conv_relu_stats_kernel,
        out_shape=(
            jax.ShapeDtypeStruct((n, hp2, wp2, cout), jnp.bfloat16),  # padded act
            jax.ShapeDtypeStruct((n * 8, cout), jnp.float32),         # sums
            jax.ShapeDtypeStruct((n * 8, cout), jnp.float32),         # centered ssq
        ),
        grid=(n,),
        in_specs=[
            pl.BlockSpec((1, hp2, wp2, cin), lambda i: (i, 0, 0, 0)),  # padded img
            pl.BlockSpec((1, cin), lambda i: (0, 0)),                  # BN scale in
            pl.BlockSpec((1, cin), lambda i: (0, 0)),                  # BN shift in
            pl.BlockSpec((kg3, cpad), lambda i: (0, 0)),               # weights
            pl.BlockSpec((1, cout), lambda i: (0, 0)),                 # bias
        ],
        out_specs=(
            pl.BlockSpec((1, hp2, wp2, cout), lambda i: (i, 0, 0, 0)),
            pl.BlockSpec((8, cout), lambda i: (i, 0)),
            pl.BlockSpec((8, cout), lambda i: (i, 0)),
        ),
        scratch_shapes=[pltpu.VMEM((hp2, wp2, cin), jnp.bfloat16)],
        compiler_params=pltpu.CompilerParams(
            dimension_semantics=("parallel",),
            vmem_limit_bytes=_vmem_limit_bytes()),
        cost_estimate=pl.CostEstimate(flops=int(flops), transcendentals=0,
                                      bytes_accessed=int(bytes_accessed)),
    )(xp, scale, shift, wcol, bias)


def _bn_affine(zp, scale, shift, out_dtype):
    n, hp2, wp2, c = zp.shape
    h, w = hp2 - 2, wp2 - 2
    return pl.pallas_call(
        _bn_affine_kernel,
        out_shape=jax.ShapeDtypeStruct((n, h, w, c), out_dtype),
        grid=(n,),
        in_specs=[
            pl.BlockSpec((1, hp2, wp2, c), lambda i: (i, 0, 0, 0)),
            pl.BlockSpec((1, c), lambda i: (0, 0)),
            pl.BlockSpec((1, c), lambda i: (0, 0)),
        ],
        out_specs=pl.BlockSpec((1, h, w, c), lambda i: (i, 0, 0, 0)),
        compiler_params=pltpu.CompilerParams(
            dimension_semantics=("parallel",),
            vmem_limit_bytes=_vmem_limit_bytes()),
        cost_estimate=pl.CostEstimate(
            flops=int(2 * n * h * w * c), transcendentals=0,
            bytes_accessed=int(zp.size * 2
                               + n * h * w * c * jnp.dtype(out_dtype).itemsize
                               + 2 * c * 4)),
    )(zp, scale, shift)


# ------------------------------ host-side glue --------------------------------
def _prep_weights(w_oihw):
    """PyTorch (Cout, Cin, 3, 3) -> (3*kg, Cpad) bf16.  Rows are three ky groups
    of width kg = roundup(3*Cin, 16), each ordered (kx, cin); output lanes padded
    to a multiple of 128 (padding lives only in this tiny weight matrix)."""
    cout, cin = w_oihw.shape[0], w_oihw.shape[1]
    kg = _round_up(3 * cin, 16)
    cpad = _round_up(cout, 128)
    wk = jnp.transpose(w_oihw, (2, 3, 1, 0)).reshape(3, 3 * cin, cout)
    wk = jnp.pad(wk, ((0, 0), (0, kg - 3 * cin), (0, cpad - cout)))
    return wk.reshape(3 * kg, cpad).astype(jnp.bfloat16)


def _bn_scale_shift(s_part, q_part, n_tiles, tile_count, gamma_r, beta_r):
    """Welford-style merge of per-tile (sum, tile-centered sum of squares) into
    batch mean / biased variance -> BatchNorm scale & shift (training mode)."""
    c = s_part.shape[1]
    s_t = s_part.reshape(n_tiles, 8, c)[:, 0, :]     # each tile wrote 8 equal rows
    q_t = q_part.reshape(n_tiles, 8, c)[:, 0, :]
    total = n_tiles * tile_count
    m_t = s_t / tile_count
    mean = jnp.sum(s_t, axis=0, keepdims=True) / total
    var = (jnp.sum(q_t, axis=0, keepdims=True)
           + tile_count * jnp.sum((m_t - mean) ** 2, axis=0, keepdims=True)) / total
    scale = gamma_r * jax.lax.rsqrt(var + EPS)
    shift = beta_r - mean * scale
    return scale, shift


def double_conv_block(x_nchw, w1, b1, w2, b2, gamma, beta):
    n, cin, h, w = x_nchw.shape
    cout = w1.shape[0]

    # NCHW -> NHWC (channels on lanes), single zero-halo pad, bf16 MXU operands.
    x_nhwc = jnp.transpose(x_nchw, (0, 2, 3, 1)).astype(jnp.bfloat16)
    xp = jnp.pad(x_nhwc, ((0, 0), (1, 1), (1, 1), (0, 0)))

    gam = gamma.reshape(1, -1).astype(jnp.float32)
    bet = beta.reshape(1, -1).astype(jnp.float32)
    ident_s = jnp.ones((1, cin), jnp.float32)
    ident_b = jnp.zeros((1, cin), jnp.float32)
    b1r = b1.reshape(1, -1).astype(jnp.float32)
    b2r = b2.reshape(1, -1).astype(jnp.float32)

    # stage 1: conv1 + ReLU (identity incoming affine), per-image BN partials.
    y_pad, s1, q1 = _conv_relu_stats(xp, ident_s, ident_b, _prep_weights(w1), b1r)
    scale1, shift1 = _bn_scale_shift(s1, q1, n, h * w, gam, bet)

    # stage 2: BatchNorm(1) affine fused into conv2 + ReLU, fresh batch stats.
    z_pad, s2, q2 = _conv_relu_stats(y_pad, scale1, shift1, _prep_weights(w2), b2r)
    scale2, shift2 = _bn_scale_shift(s2, q2, n, h * w, gam, bet)

    # stage 3: final BatchNorm affine (its stats need the whole batch).
    out_nhwc = _bn_affine(z_pad, scale2, shift2, jnp.float32)
    return jnp.transpose(out_nhwc, (0, 3, 1, 2))              # back to NCHW


# ---------------- pure-JAX reference (for correctness check) ----------------
def reference(x, w1, b1, w2, b2, gamma, beta, bf16_rounding=False):
    """Exact module semantics when bf16_rounding=False; with bf16_rounding=True it
    reproduces the kernel's bf16 rounding points (operands + stored activations)."""
    def rnd(v):
        return v.astype(jnp.bfloat16).astype(jnp.float32) if bf16_rounding else v

    def conv(v, wgt, b):
        y = jax.lax.conv_general_dilated(
            rnd(v), rnd(wgt), (1, 1), "SAME",
            dimension_numbers=("NCHW", "OIHW", "NCHW"),
            precision=jax.lax.Precision.HIGHEST)
        return y + b[None, :, None, None]

    def bn(v):
        mean = jnp.mean(v, axis=(0, 2, 3), keepdims=True)
        var = jnp.mean((v - mean) ** 2, axis=(0, 2, 3), keepdims=True)
        return ((v - mean) * jax.lax.rsqrt(var + EPS)
                * gamma[None, :, None, None] + beta[None, :, None, None])

    h1 = bn(rnd(jax.nn.relu(conv(x, w1, b1))))
    return bn(rnd(jax.nn.relu(conv(h1, w2, b2))))


if __name__ == "__main__":
    key = jax.random.PRNGKey(0)
    k1, k2, k3, k4, k5 = jax.random.split(key, 5)

    n, cin, cout, h, w = 2, 4, 8, 16, 16
    x = jax.random.normal(k1, (n, cin, h, w), jnp.float32)
    # Deterministic synthetic parameters (shapes from the module's __init__).
    w1 = jax.random.normal(k2, (cout, cin, 3, 3), jnp.float32) * 0.1
    b1 = jax.random.normal(k3, (cout,), jnp.float32) * 0.1
    w2 = jax.random.normal(k4, (cout, cout, 3, 3), jnp.float32) * 0.1
    b2 = jax.random.normal(k5, (cout,), jnp.float32) * 0.1
    gamma = jnp.ones((cout,), jnp.float32)   # nn.BatchNorm2d default affine init
    beta = jnp.zeros((cout,), jnp.float32)

    out = jax.block_until_ready(double_conv_block(x, w1, b1, w2, b2, gamma, beta))
    assert out.shape == (n, cout, h, w), out.shape

    # Tight check: reference with the kernel's bf16 rounding points reproduced
    # (isolates kernel logic from bf16 quantization noise).
    ref_bf = jax.block_until_ready(
        reference(x, w1, b1, w2, b2, gamma, beta, bf16_rounding=True))
    err_bf = float(jnp.max(jnp.abs(out - ref_bf)))
    assert jnp.allclose(out, ref_bf, atol=1e-2, rtol=1e-2), f"bf16-ref err {err_bf}"

    # Loose sanity check vs exact f32 module semantics (difference is the
    # inherent bf16 quantization of MXU operands / stored activations).
    ref32 = jax.block_until_ready(reference(x, w1, b1, w2, b2, gamma, beta))
    err32 = float(jnp.max(jnp.abs(out - ref32)))
    assert jnp.allclose(out, ref32, atol=2e-1, rtol=2e-1), f"f32-ref err {err32}"

    print("KERNEL_OK")
</pallas_src>

<mosaic_0001>
module attributes {stable_mosaic.version = 11 : i64} {
  func.func @_conv_relu_stats_kernel(%arg0: i32, %arg1: memref<1x18x18x4xbf16, #tpu.memory_space<vmem>>, %arg2: memref<1x4xf32, #tpu.memory_space<vmem>>, %arg3: memref<1x4xf32, #tpu.memory_space<vmem>>, %arg4: memref<48x128xbf16, #tpu.memory_space<vmem>>, %arg5: memref<1x8xf32, #tpu.memory_space<vmem>>, %arg6: memref<1x18x18x8xbf16, #tpu.memory_space<vmem>>, %arg7: memref<8x8xf32, #tpu.memory_space<vmem>>, %arg8: memref<8x8xf32, #tpu.memory_space<vmem>>, %arg9: memref<18x18x4xbf16, #tpu.memory_space<vmem>>) attributes {dimension_semantics = [#tpu.dimension_semantics<parallel>], iteration_bounds = array<i64: 2>, scalar_prefetch = 0 : i64, scratch_operands = 1 : i64, tpu.core_type = #tpu.core_type<tc>, window_params = [{transform_indices = @transform_0, window_bounds = array<i64: 1, 18, 18, 4>}, {pipeline_mode = #tpu.pipeline_mode<synchronous>, transform_indices = @transform_1, window_bounds = array<i64: 1, 4>}, {pipeline_mode = #tpu.pipeline_mode<synchronous>, transform_indices = @transform_2, window_bounds = array<i64: 1, 4>}, {pipeline_mode = #tpu.pipeline_mode<synchronous>, transform_indices = @transform_3, window_bounds = array<i64: 48, 128>}, {pipeline_mode = #tpu.pipeline_mode<synchronous>, transform_indices = @transform_4, window_bounds = array<i64: 1, 8>}, {transform_indices = @transform_5, window_bounds = array<i64: 1, 18, 18, 8>}, {transform_indices = @transform_6, window_bounds = array<i64: 8, 8>}, {transform_indices = @transform_7, window_bounds = array<i64: 8, 8>}]} {
    %c0 = arith.constant 0 : index
    %c1 = arith.constant 1 : index
    %c1_0 = arith.constant 1 : index
    %c0_1 = arith.constant 0 : index
    %0 = vector.load %arg1[%c0, %c1, %c1_0, %c0_1] : memref<1x18x18x4xbf16, #tpu.memory_space<vmem>>, vector<1x16x16x4xbf16>
    %1 = vector.shape_cast %0 : vector<1x16x16x4xbf16> to vector<16x16x4xbf16>
    %2 = arith.extf %1 : vector<16x16x4xbf16> to vector<16x16x4xf32>
    %c0_2 = arith.constant 0 : index
    %c0_3 = arith.constant 0 : index
    %3 = vector.load %arg2[%c0_2, %c0_3] : memref<1x4xf32, #tpu.memory_space<vmem>>, vector<1x4xf32>
    %4 = vector.shape_cast %3 : vector<1x4xf32> to vector<1x1x4xf32>
    %5 = vector.broadcast %4 : vector<1x1x4xf32> to vector<16x16x4xf32>
    %6 = arith.mulf %2, %5 : vector<16x16x4xf32>
    %c0_4 = arith.constant 0 : index
    %c0_5 = arith.constant 0 : index
    %7 = vector.load %arg3[%c0_4, %c0_5] : memref<1x4xf32, #tpu.memory_space<vmem>>, vector<1x4xf32>
    %8 = vector.shape_cast %7 : vector<1x4xf32> to vector<1x1x4xf32>
    %9 = vector.broadcast %8 : vector<1x1x4xf32> to vector<16x16x4xf32>
    %10 = arith.addf %6, %9 : vector<16x16x4xf32>
    %cst = arith.constant 0.000000e+00 : bf16
    %11 = vector.broadcast %cst : bf16 to vector<18x18x4xbf16>
    %c0_6 = arith.constant 0 : index
    %c0_7 = arith.constant 0 : index
    %c0_8 = arith.constant 0 : index
    %12 = vector.load %arg9[%c0_6, %c0_7, %c0_8] : memref<18x18x4xbf16, #tpu.memory_space<vmem>>, vector<18x18x4xbf16>
    tpu.vector_store %arg9[%c0_6, %c0_7, %c0_8], %11 {strides = array<i32>} : memref<18x18x4xbf16, #tpu.memory_space<vmem>>, vector<18x18x4xbf16>,
    %13 = arith.truncf %10 : vector<16x16x4xf32> to vector<16x16x4xbf16>
    %c1_9 = arith.constant 1 : index
    %c1_10 = arith.constant 1 : index
    %c0_11 = arith.constant 0 : index
    %14 = vector.load %arg9[%c1_9, %c1_10, %c0_11] : memref<18x18x4xbf16, #tpu.memory_space<vmem>>, vector<16x16x4xbf16>
    tpu.vector_store %arg9[%c1_9, %c1_10, %c0_11], %13 {strides = array<i32>} : memref<18x18x4xbf16, #tpu.memory_space<vmem>>, vector<16x16x4xbf16>,
    %c0_12 = arith.constant 0 : index
    %c0_13 = arith.constant 0 : index
    %c0_14 = arith.constant 0 : index
    %15 = vector.load %arg9[%c0_12, %c0_13, %c0_14] : memref<18x18x4xbf16, #tpu.memory_space<vmem>>, vector<18x18x4xbf16>
    %cst_15 = arith.constant 0.000000e+00 : f32
    %16 = vector.broadcast %cst_15 : f32 to vector<256x128xf32>
    %17 = vector.extract_strided_slice %15 {offsets = [0, 0, 0], sizes = [16, 18, 4], strides = [1, 1, 1]} : vector<18x18x4xbf16> to vector<16x18x4xbf16>
    %18 = vector.extract_strided_slice %17 {offsets = [0, 0, 0], sizes = [16, 16, 4], strides = [1, 1, 1]} : vector<16x18x4xbf16> to vector<16x16x4xbf16>
    %19 = vector.extract_strided_slice %17 {offsets = [0, 1, 0], sizes = [16, 16, 4], strides = [1, 1, 1]} : vector<16x18x4xbf16> to vector<16x16x4xbf16>
    %20 = vector.extract_strided_slice %17 {offsets = [0, 2, 0], sizes = [16, 16, 4], strides = [1, 1, 1]} : vector<16x18x4xbf16> to vector<16x16x4xbf16>
    %cst_16 = arith.constant 0.000000e+00 : bf16
    %21 = vector.broadcast %cst_16 : bf16 to vector<16x16x4xbf16>
    %22 = tpu.concatenate %18, %19, %20, %21 in 2 : vector<16x16x4xbf16>, vector<16x16x4xbf16>, vector<16x16x4xbf16>, vector<16x16x4xbf16> -> vector<16x16x16xbf16>
    %23 = vector.shape_cast %22 : vector<16x16x16xbf16> to vector<256x16xbf16>
    %c0_17 = arith.constant 0 : index
    %c0_18 = arith.constant 0 : index
    %24 = vector.load %arg4[%c0_17, %c0_18] : memref<48x128xbf16, #tpu.memory_space<vmem>>, vector<16x128xbf16>
    %cst_19 = arith.constant dense<0.000000e+00> : vector<256x128xf32>
    %25 = tpu.matmul %23, %24, %cst_19 {dimension_numbers = #tpu.dot_dimension_numbers<[1], [0], [0], [1], [0, 0, 1, 1], [], []>} : vector<256x16xbf16>, vector<16x128xbf16>, vector<256x128xf32> -> vector<256x128xf32>
    %26 = arith.addf %16, %25 : vector<256x128xf32>
    %27 = vector.extract_strided_slice %15 {offsets = [1, 0, 0], sizes = [16, 18, 4], strides = [1, 1, 1]} : vector<18x18x4xbf16> to vector<16x18x4xbf16>
    %28 = vector.extract_strided_slice %27 {offsets = [0, 0, 0], sizes = [16, 16, 4], strides = [1, 1, 1]} : vector<16x18x4xbf16> to vector<16x16x4xbf16>
    %29 = vector.extract_strided_slice %27 {offsets = [0, 1, 0], sizes = [16, 16, 4], strides = [1, 1, 1]} : vector<16x18x4xbf16> to vector<16x16x4xbf16>
    %30 = vector.extract_strided_slice %27 {offsets = [0, 2, 0], sizes = [16, 16, 4], strides = [1, 1, 1]} : vector<16x18x4xbf16> to vector<16x16x4xbf16>
    %cst_20 = arith.constant 0.000000e+00 : bf16
    %31 = vector.broadcast %cst_20 : bf16 to vector<16x16x4xbf16>
    %32 = tpu.concatenate %28, %29, %30, %31 in 2 : vector<16x16x4xbf16>, vector<16x16x4xbf16>, vector<16x16x4xbf16>, vector<16x16x4xbf16> -> vector<16x16x16xbf16>
    %33 = vector.shape_cast %32 : vector<16x16x16xbf16> to vector<256x16xbf16>
    %c16 = arith.constant 16 : index
    %c0_21 = arith.constant 0 : index
    %34 = vector.load %arg4[%c16, %c0_21] : memref<48x128xbf16, #tpu.memory_space<vmem>>, vector<16x128xbf16>
    %cst_22 = arith.constant dense<0.000000e+00> : vector<256x128xf32>
    %35 = tpu.matmul %33, %34, %cst_22 {dimension_numbers = #tpu.dot_dimension_numbers<[1], [0], [0], [1], [0, 0, 1, 1], [], []>} : vector<256x16xbf16>, vector<16x128xbf16>, vector<256x128xf32> -> vector<256x128xf32>
    %36 = arith.addf %26, %35 : vector<256x128xf32>
    %37 = vector.extract_strided_slice %15 {offsets = [2, 0, 0], sizes = [16, 18, 4], strides = [1, 1, 1]} : vector<18x18x4xbf16> to vector<16x18x4xbf16>
    %38 = vector.extract_strided_slice %37 {offsets = [0, 0, 0], sizes = [16, 16, 4], strides = [1, 1, 1]} : vector<16x18x4xbf16> to vector<16x16x4xbf16>
    %39 = vector.extract_strided_slice %37 {offsets = [0, 1, 0], sizes = [16, 16, 4], strides = [1, 1, 1]} : vector<16x18x4xbf16> to vector<16x16x4xbf16>
    %40 = vector.extract_strided_slice %37 {offsets = [0, 2, 0], sizes = [16, 16, 4], strides = [1, 1, 1]} : vector<16x18x4xbf16> to vector<16x16x4xbf16>
    %cst_23 = arith.constant 0.000000e+00 : bf16
    %41 = vector.broadcast %cst_23 : bf16 to vector<16x16x4xbf16>
    %42 = tpu.concatenate %38, %39, %40, %41 in 2 : vector<16x16x4xbf16>, vector<16x16x4xbf16>, vector<16x16x4xbf16>, vector<16x16x4xbf16> -> vector<16x16x16xbf16>
    %43 = vector.shape_cast %42 : vector<16x16x16xbf16> to vector<256x16xbf16>
    %c32 = arith.constant 32 : index
    %c0_24 = arith.constant 0 : index
    %44 = vector.load %arg4[%c32, %c0_24] : memref<48x128xbf16, #tpu.memory_space<vmem>>, vector<16x128xbf16>
    %cst_25 = arith.constant dense<0.000000e+00> : vector<256x128xf32>
    %45 = tpu.matmul %43, %44, %cst_25 {dimension_numbers = #tpu.dot_dimension_numbers<[1], [0], [0], [1], [0, 0, 1, 1], [], []>} : vector<256x16xbf16>, vector<16x128xbf16>, vector<256x128xf32> -> vector<256x128xf32>
    %46 = arith.addf %36, %45 : vector<256x128xf32>
    %47 = vector.extract_strided_slice %46 {offsets = [0, 0], sizes = [256, 8], strides = [1, 1]} : vector<256x128xf32> to vector<256x8xf32>
    %c0_26 = arith.constant 0 : index
    %c0_27 = arith.constant 0 : index
    %48 = vector.load %arg5[%c0_26, %c0_27] : memref<1x8xf32, #tpu.memory_space<vmem>>, vector<1x8xf32>
    %49 = vector.broadcast %48 : vector<1x8xf32> to vector<256x8xf32>
    %50 = arith.addf %47, %49 : vector<256x8xf32>
    %cst_28 = arith.constant 0.000000e+00 : f32
    %51 = vector.broadcast %cst_28 : f32 to vector<256x8xf32>
    %52 = arith.maximumf %50, %51 : vector<256x8xf32>
    %cst_29 = arith.constant dense<0.000000e+00> : vector<8xf32>
    %53 = vector.multi_reduction <add>, %52, %cst_29 [0] : vector<256x8xf32> to vector<8xf32>
    %54 = vector.shape_cast %53 : vector<8xf32> to vector<1x8xf32>
    %cst_30 = arith.constant 3.906250e-03 : f32
    %55 = vector.broadcast %cst_30 : f32 to vector<1x8xf32>
    %56 = arith.mulf %54, %55 : vector<1x8xf32>
    %57 = vector.broadcast %56 : vector<1x8xf32> to vector<256x8xf32>
    %58 = arith.subf %52, %57 : vector<256x8xf32>
    %59 = arith.mulf %58, %58 : vector<256x8xf32>
    %cst_31 = arith.constant dense<0.000000e+00> : vector<8xf32>
    %60 = vector.multi_reduction <add>, %59, %cst_31 [0] : vector<256x8xf32> to vector<8xf32>
    %61 = vector.shape_cast %60 : vector<8xf32> to vector<1x8xf32>
    %cst_32 = arith.constant 0.000000e+00 : f32
    %62 = vector.broadcast %cst_32 : f32 to vector<8x8xf32>
    %63 = vector.broadcast %54 : vector<1x8xf32> to vector<8x8xf32>
    %64 = arith.addf %62, %63 : vector<8x8xf32>
    %c0_33 = arith.constant 0 : index
    %c0_34 = arith.constant 0 : index
    %65 = vector.load %arg7[%c0_33, %c0_34] : memref<8x8xf32, #tpu.memory_space<vmem>>, vector<8x8xf32>
    tpu.vector_store %arg7[%c0_33, %c0_34], %64 {strides = array<i32>} : memref<8x8xf32, #tpu.memory_space<vmem>>, vector<8x8xf32>,
    %66 = vector.broadcast %61 : vector<1x8xf32> to vector<8x8xf32>
    %67 = arith.addf %62, %66 : vector<8x8xf32>
    %c0_35 = arith.constant 0 : index
    %c0_36 = arith.constant 0 : index
    %68 = vector.load %arg8[%c0_35, %c0_36] : memref<8x8xf32, #tpu.memory_space<vmem>>, vector<8x8xf32>
    tpu.vector_store %arg8[%c0_35, %c0_36], %67 {strides = array<i32>} : memref<8x8xf32, #tpu.memory_space<vmem>>, vector<8x8xf32>,
    %cst_37 = arith.constant 0.000000e+00 : bf16
    %69 = vector.broadcast %cst_37 : bf16 to vector<1x18x18x8xbf16>
    %c0_38 = arith.constant 0 : index
    %c0_39 = arith.constant 0 : index
    %c0_40 = arith.constant 0 : index
    %c0_41 = arith.constant 0 : index
    %70 = vector.load %arg6[%c0_38, %c0_39, %c0_40, %c0_41] : memref<1x18x18x8xbf16, #tpu.memory_space<vmem>>, vector<1x18x18x8xbf16>
    tpu.vector_store %arg6[%c0_38, %c0_39, %c0_40, %c0_41], %69 {strides = array<i32>} : memref<1x18x18x8xbf16, #tpu.memory_space<vmem>>, vector<1x18x18x8xbf16>,
    %71 = vector.shape_cast %52 : vector<256x8xf32> to vector<16x16x8xf32>
    %72 = arith.truncf %71 : vector<16x16x8xf32> to vector<16x16x8xbf16>
    %c0_42 = arith.constant 0 : index
    %c1_43 = arith.constant 1 : index
    %c1_44 = arith.constant 1 : index
    %c0_45 = arith.constant 0 : index
    %73 = vector.load %arg6[%c0_42, %c1_43, %c1_44, %c0_45] : memref<1x18x18x8xbf16, #tpu.memory_space<vmem>>, vector<1x16x16x8xbf16>
    %74 = vector.shape_cast %73 : vector<1x16x16x8xbf16> to vector<16x16x8xbf16>
    %75 = vector.shape_cast %72 : vector<16x16x8xbf16> to vector<1x16x16x8xbf16>
    tpu.vector_store %arg6[%c0_42, %c1_43, %c1_44, %c0_45], %75 {strides = array<i32>} : memref<1x18x18x8xbf16, #tpu.memory_space<vmem>>, vector<1x16x16x8xbf16>,
    return
  }
  func.func @transform_0(%arg0: i32) -> (i32, i32, i32, i32) {
    %c0_i32 = arith.constant 0 : i32
    %c0_i32_0 = arith.constant 0 : i32
    %c0_i32_1 = arith.constant 0 : i32
    %c0_i32_2 = arith.constant 0 : i32
    return %arg0, %c0_i32, %c0_i32_0, %c0_i32_1 : i32, i32, i32, i32
  }
  func.func @transform_1(%arg0: i32) -> (i32, i32) {
    %c0_i32 = arith.constant 0 : i32
    %c0_i32_0 = arith.constant 0 : i32
    %c0_i32_1 = arith.constant 0 : i32
    return %c0_i32, %c0_i32_0 : i32, i32
  }
  func.func @transform_2(%arg0: i32) -> (i32, i32) {
    %c0_i32 = arith.constant 0 : i32
    %c0_i32_0 = arith.constant 0 : i32
    %c0_i32_1 = arith.constant 0 : i32
    return %c0_i32, %c0_i32_0 : i32, i32
  }
  func.func @transform_3(%arg0: i32) -> (i32, i32) {
    %c0_i32 = arith.constant 0 : i32
    %c0_i32_0 = arith.constant 0 : i32
    %c0_i32_1 = arith.constant 0 : i32
    return %c0_i32, %c0_i32_0 : i32, i32
  }
  func.func @transform_4(%arg0: i32) -> (i32, i32) {
    %c0_i32 = arith.constant 0 : i32
    %c0_i32_0 = arith.constant 0 : i32
    %c0_i32_1 = arith.constant 0 : i32
    return %c0_i32, %c0_i32_0 : i32, i32
  }
  func.func @transform_5(%arg0: i32) -> (i32, i32, i32, i32) {
    %c0_i32 = arith.constant 0 : i32
    %c0_i32_0 = arith.constant 0 : i32
    %c0_i32_1 = arith.constant 0 : i32
    %c0_i32_2 = arith.constant 0 : i32
    return %arg0, %c0_i32, %c0_i32_0, %c0_i32_1 : i32, i32, i32, i32
  }
  func.func @transform_6(%arg0: i32) -> (i32, i32) {
    %c0_i32 = arith.constant 0 : i32
    %c0_i32_0 = arith.constant 0 : i32
    return %arg0, %c0_i32 : i32, i32
  }
  func.func @transform_7(%arg0: i32) -> (i32, i32) {
    %c0_i32 = arith.constant 0 : i32
    %c0_i32_0 = arith.constant 0 : i32
    return %arg0, %c0_i32 : i32, i32
  }
}

</mosaic_0001>

<llo_original>
// kernel: tpu_custom_call.1
$region0: #{tpu_custom_call.1}
  #allocation0 [shape = 'u32[]', space=smem, size = 0x4, offset = 0x4, fixed_abs, tag = 'smem constant byte address 0x4 - core index']
  #allocation1 [shape = 'u32[72,128]{1,0:T(1,128)}', space=vmem, size = 0x9000, scoped, tag = 'internal scratch']
  #allocation2 [shape = 'bf16[18,18,4]{2,1,0:T(8,128)(2,1)}', space=vmem, size = 0x1b000, scoped, tag = 'scratch operand']
  %s0 = inlined_call_operand.vmem [shape: bf16[2,18,18,4], index: 0, kind: input, shape index: {}]
  %s1 = inlined_call_operand.vmem [shape: f32[1,4], index: 1, kind: input, shape index: {}]
  %s2 = inlined_call_operand.vmem [shape: f32[1,4], index: 2, kind: input, shape index: {}]
  %s3 = inlined_call_operand.vmem [shape: bf16[48,128], index: 3, kind: input, shape index: {}]
  %s4 = inlined_call_operand.vmem [shape: f32[1,8], index: 4, kind: input, shape index: {}]
  %s5 = inlined_call_operand.vmem [shape: bf16[2,18,18,8], index: 5, kind: output, shape index: {0}]
  %s6 = inlined_call_operand.vmem [shape: f32[16,8], index: 6, kind: output, shape index: {1}]
  %s7 = inlined_call_operand.vmem [shape: f32[16,8], index: 7, kind: output, shape index: {2}]
  %8 = xla_tuple %s5, %s6, %s7
  %s9 = sld [smem:[#allocation0]]
  $region69: #{tpu_custom_call.1} parent=0
    _
  %s11 = ssub.s32 1, %s9
  %s12 = scalar_select 0, %s11, %s9
  loop: start=0, step=1, limit=4
  $region2: #{tpu_custom_call.1} parent=0 // loop_pre_header
    _
  $region3: #{tpu_custom_call.1} parent=0 // loop_header
    %s14 = sphi 0, %s18
    %p15 = scmp.ge.s32.totalorder %s14, 4
    %s24 = sphi 0, %s26
    %s27 = sphi 0, %s24
    %s28 = sphi 0, %s27
    %s44 = sphi 0, %s28
    %s48 = sphi 0, %s48
    %s50 = sphi 0, %s48
    %s51 = sphi 0, %s50
    %s65 = sphi 0, %s51
    %s69 = sphi 0, %s69
    %s71 = sphi 0, %s69
    %s72 = sphi 0, %s71
    %s86 = sphi 0, %s72
    %s90 = sphi 0, %s90
    %s92 = sphi 0, %s90
    %s93 = sphi 0, %s92
    %s107 = sphi 0, %s93
    %s111 = sphi 0, %s111
    %s113 = sphi 0, %s111
    %s114 = sphi 0, %s113
    %s128 = sphi 0, %s114
    %s134 = sphi 0, %s136
    %s137 = sphi 0, %s134
    %s138 = sphi 0, %s137
    %s154 = sphi 0, %s138
    %s160 = sphi 0, %s162
    %s163 = sphi 0, %s160
    %s164 = sphi 0, %s163
    %s180 = sphi 0, %s164
    %s186 = sphi 0, %s188
    %s189 = sphi 0, %s186
    %s190 = sphi 0, %s189
    %s206 = sphi 0, %s190
  $region4: #{tpu_custom_call.1} parent=0 // loop_header_branch
    %17 = sbr.rel (%p15) target = $region8
  $region5: #{tpu_custom_call.1} parent=0 // loop_body
    %s19 = ssub.s32 %s14, 1
    %s20 = ssub.s32 %s14, 2
    %s21 = sadd.s32 %s14, 1
    %s22 = ssub.s32 %s14, %s21
    %p23 = scmp.eq.s32.totalorder %s22, 0
    %s25 = sadd.s32 %s24, 1
    %s26 = scalar_select %p23, %s24, %s25
    %p29 = pneg %p23
    %p30 = scmp.eq.s32.totalorder %s14, 1
    %p31 = por %p29, %p30
    %p32 = scmp.ne.s32.totalorder %s24, %s27
    %p33 = scmp.eq.s32.totalorder %s14, 0
    %p34 = por %p32, %p33
    %p35 = scmp.ne.s32.totalorder %s24, %s27
    %p36 = scmp.eq.s32.totalorder %s19, 1
    %p37 = por %p35, %p36
    %p38 = scmp.ne.s32.totalorder %s27, %s28
    %p39 = scmp.eq.s32.totalorder %s19, 0
    %p40 = por %p38, %p39
    %p41 = scmp.ne.s32.totalorder %s27, %s28
    %p42 = scmp.eq.s32.totalorder %s20, 1
    %p43 = por %p41, %p42
    %p45 = scmp.ne.s32.totalorder %s28, %s44
    %p46 = scmp.eq.s32.totalorder %s20, 0
    %p47 = por %p45, %p46
    %s49 = sadd.s32 %s48, 1
    %p52 = scmp.eq.s32.totalorder %s14, 1
    %p53 = scmp.ne.s32.totalorder %s48, %s50
    %p54 = scmp.eq.s32.totalorder %s14, 0
    %p55 = por %p53, %p54
    %p56 = scmp.ne.s32.totalorder %s48, %s50
    %p57 = scmp.eq.s32.totalorder %s19, 1
    %p58 = por %p56, %p57
    %p59 = scmp.ne.s32.totalorder %s50, %s51
    %p60 = scmp.eq.s32.totalorder %s19, 0
    %p61 = por %p59, %p60
    %p62 = scmp.ne.s32.totalorder %s50, %s51
    %p63 = scmp.eq.s32.totalorder %s20, 1
    %p64 = por %p62, %p63
    %p66 = scmp.ne.s32.totalorder %s51, %s65
    %p67 = scmp.eq.s32.totalorder %s20, 0
    %p68 = por %p66, %p67
    %s70 = sadd.s32 %s69, 1
    %p73 = scmp.eq.s32.totalorder %s14, 1
    %p74 = scmp.ne.s32.totalorder %s69, %s71
    %p75 = scmp.eq.s32.totalorder %s14, 0
    %p76 = por %p74, %p75
    %p77 = scmp.ne.s32.totalorder %s69, %s71
    %p78 = scmp.eq.s32.totalorder %s19, 1
    %p79 = por %p77, %p78
    %p80 = scmp.ne.s32.totalorder %s71, %s72
    %p81 = scmp.eq.s32.totalorder %s19, 0
    %p82 = por %p80, %p81
    %p83 = scmp.ne.s32.totalorder %s71, %s72
    %p84 = scmp.eq.s32.totalorder %s20, 1
    %p85 = por %p83, %p84
    %p87 = scmp.ne.s32.totalorder %s72, %s86
    %p88 = scmp.eq.s32.totalorder %s20, 0
    %p89 = por %p87, %p88
    %s91 = sadd.s32 %s90, 1
    %p94 = scmp.eq.s32.totalorder %s14, 1
    %p95 = scmp.ne.s32.totalorder %s90, %s92
    %p96 = scmp.eq.s32.totalorder %s14, 0
    %p97 = por %p95, %p96
    %p98 = scmp.ne.s32.totalorder %s90, %s92
    %p99 = scmp.eq.s32.totalorder %s19, 1
    %p100 = por %p98, %p99
    %p101 = scmp.ne.s32.totalorder %s92, %s93
    %p102 = scmp.eq.s32.totalorder %s19, 0
    %p103 = por %p101, %p102
    %p104 = scmp.ne.s32.totalorder %s92, %s93
    %p105 = scmp.eq.s32.totalorder %s20, 1
    %p106 = por %p104, %p105
    %p108 = scmp.ne.s32.totalorder %s93, %s107
    %p109 = scmp.eq.s32.totalorder %s20, 0
    %p110 = por %p108, %p109
    %s112 = sadd.s32 %s111, 1
    %p115 = scmp.eq.s32.totalorder %s14, 1
    %p116 = scmp.ne.s32.totalorder %s111, %s113
    %p117 = scmp.eq.s32.totalorder %s14, 0
    %p118 = por %p116, %p117
    %p119 = scmp.ne.s32.totalorder %s111, %s113
    %p120 = scmp.eq.s32.totalorder %s19, 1
    %p121 = por %p119, %p120
    %p122 = scmp.ne.s32.totalorder %s113, %s114
    %p123 = scmp.eq.s32.totalorder %s19, 0
    %p124 = por %p122, %p123
    %p125 = scmp.ne.s32.totalorder %s113, %s114
    %p126 = scmp.eq.s32.totalorder %s20, 1
    %p127 = por %p125, %p126
    %p129 = scmp.ne.s32.totalorder %s114, %s128
    %p130 = scmp.eq.s32.totalorder %s20, 0
    %p131 = por %p129, %p130
    %s132 = ssub.s32 %s14, %s21
    %p133 = scmp.eq.s32.totalorder %s132, 0
    %s135 = sadd.s32 %s134, 1
    %s136 = scalar_select %p133, %s134, %s135
    %p139 = pneg %p133
    %p140 = scmp.eq.s32.totalorder %s14, 1
    %p141 = por %p139, %p140
    %p142 = scmp.ne.s32.totalorder %s134, %s137
    %p143 = scmp.eq.s32.totalorder %s14, 0
    %p144 = por %p142, %p143
    %p145 = scmp.ne.s32.totalorder %s134, %s137
    %p146 = scmp.eq.s32.totalorder %s19, 1
    %p147 = por %p145, %p146
    %p148 = scmp.ne.s32.totalorder %s137, %s138
    %p149 = scmp.eq.s32.totalorder %s19, 0
    %p150 = por %p148, %p149
    %p151 = scmp.ne.s32.totalorder %s137, %s138
    %p152 = scmp.eq.s32.totalorder %s20, 1
    %p153 = por %p151, %p152
    %p155 = scmp.ne.s32.totalorder %s138, %s154
    %p156 = scmp.eq.s32.totalorder %s20, 0
    %p157 = por %p155, %p156
    %s158 = ssub.s32 %s14, %s21
    %p159 = scmp.eq.s32.totalorder %s158, 0
    %s161 = sadd.s32 %s160, 1
    %s162 = scalar_select %p159, %s160, %s161
    %p165 = pneg %p159
    %p166 = scmp.eq.s32.totalorder %s14, 1
    %p167 = por %p165, %p166
    %p168 = scmp.ne.s32.totalorder %s160, %s163
    %p169 = scmp.eq.s32.totalorder %s14, 0
    %p170 = por %p168, %p169
    %p171 = scmp.ne.s32.totalorder %s160, %s163
    %p172 = scmp.eq.s32.totalorder %s19, 1
    %p173 = por %p171, %p172
    %p174 = scmp.ne.s32.totalorder %s163, %s164
    %p175 = scmp.eq.s32.totalorder %s19, 0
    %p176 = por %p174, %p175
    %p177 = scmp.ne.s32.totalorder %s163, %s164
    %p178 = scmp.eq.s32.totalorder %s20, 1
    %p179 = por %p177, %p178
    %p181 = scmp.ne.s32.totalorder %s164, %s180
    %p182 = scmp.eq.s32.totalorder %s20, 0
    %p183 = por %p181, %p182
    %s184 = ssub.s32 %s14, %s21
    %p185 = scmp.eq.s32.totalorder %s184, 0
    %s187 = sadd.s32 %s186, 1
    %s188 = scalar_select %p185, %s186, %s187
    %p191 = pneg %p185
    %p192 = scmp.eq.s32.totalorder %s14, 1
    %p193 = por %p191, %p192
    %p194 = scmp.ne.s32.totalorder %s186, %s189
    %p195 = scmp.eq.s32.totalorder %s14, 0
    %p196 = por %p194, %p195
    %p197 = scmp.ne.s32.totalorder %s186, %s189
    %p198 = scmp.eq.s32.totalorder %s19, 1
    %p199 = por %p197, %p198
    %p200 = scmp.ne.s32.totalorder %s189, %s190
    %p201 = scmp.eq.s32.totalorder %s19, 0
    %p202 = por %p200, %p201
    %p203 = scmp.ne.s32.totalorder %s189, %s190
    %p204 = scmp.eq.s32.totalorder %s20, 1
    %p205 = por %p203, %p204
    %p207 = scmp.ne.s32.totalorder %s190, %s206
    %p208 = scmp.eq.s32.totalorder %s20, 0
    %p209 = por %p207, %p208
    %p210 = scmp.le.s32.totalorder 1, %s14
    %p211 = scmp.lt.s32.totalorder %s14, 3
    %p212 = pnand %p210, %p211
    %p213 = pneg %p212
    // Predicated region
    $region9: #{tpu_custom_call.1} parent=5 // pred_check
      _
    $region10: #{tpu_custom_call.1} parent=5 // pred_check_branch
      %215 = sbr.rel (%p212) target = $region12
    $region11: #{tpu_custom_call.1} parent=5 // pred_region
      %s216 = ssub.s32 %s14, 1
      // Predicated region
      $region13: #{tpu_custom_call.1} parent=11 // pred_check
        %p217 = pneg %p61
      $region14: #{tpu_custom_call.1} parent=11 // pred_check_branch
        %219 = sbr.rel (%p217) target = $region16
      $region15: #{tpu_custom_call.1} parent=11 // pred_region
        _
      $region16: #{tpu_custom_call.1} parent=11 // pred_fallthru
        _
      // Predicated region
      $region17: #{tpu_custom_call.1} parent=11 // pred_check
        %p220 = pneg %p82
      $region18: #{tpu_custom_call.1} parent=11 // pred_check_branch
        %222 = sbr.rel (%p220) target = $region20
      $region19: #{tpu_custom_call.1} parent=11 // pred_region
        _
      $region20: #{tpu_custom_call.1} parent=11 // pred_fallthru
        _
      // Predicated region
      $region21: #{tpu_custom_call.1} parent=11 // pred_check
        %p223 = pneg %p103
      $region22: #{tpu_custom_call.1} parent=11 // pred_check_branch
        %225 = sbr.rel (%p223) target = $region24
      $region23: #{tpu_custom_call.1} parent=11 // pred_region
        _
      $region24: #{tpu_custom_call.1} parent=11 // pred_fallthru
        _
      // Predicated region
      $region25: #{tpu_custom_call.1} parent=11 // pred_check
        %p226 = pneg %p124
      $region26: #{tpu_custom_call.1} parent=11 // pred_check_branch
        %228 = sbr.rel (%p226) target = $region28
      $region27: #{tpu_custom_call.1} parent=11 // pred_region
        _
      $region28: #{tpu_custom_call.1} parent=11 // pred_fallthru
        _
    $region12: #{tpu_custom_call.1} parent=5 // pred_fallthru
      _
    %p229 = scmp.lt.s32.totalorder %s14, 2
    // Predicated region
    $region29: #{tpu_custom_call.1} parent=5 // pred_check
      %p230 = pneg %p229
    $region30: #{tpu_custom_call.1} parent=5 // pred_check_branch
      %232 = sbr.rel (%p230) target = $region32
    $region31: #{tpu_custom_call.1} parent=5 // pred_region
      // Predicated region
      $region33: #{tpu_custom_call.1} parent=31 // pred_check
        %p233 = pneg %p34
      $region34: #{tpu_custom_call.1} parent=31 // pred_check_branch
        %235 = sbr.rel (%p233) target = $region36
      $region35: #{tpu_custom_call.1} parent=31 // pred_region
        %p236 = scmp.lt.s32.totalorder %s14, 1
        %s237 = scalar_select %p236, %s14, 1
        %s238 = smul.addr %s237, 54
        %s239 = smul.addr %s238, 4
        %s240 = scalar_lea.vmem %s0, %s239
      $region36: #{tpu_custom_call.1} parent=31 // pred_fallthru
        _
    $region32: #{tpu_custom_call.1} parent=5 // pred_fallthru
      _
    %p241 = scmp.le.s32.totalorder 1, %s14
    %p242 = scmp.lt.s32.totalorder %s14, 3
    %p243 = pnand %p241, %p242
    %p244 = pneg %p243
    // Predicated region
    $region37: #{tpu_custom_call.1} parent=5 // pred_check
      _
    $region38: #{tpu_custom_call.1} parent=5 // pred_check_branch
      %246 = sbr.rel (%p243) target = $region40
    $region39: #{tpu_custom_call.1} parent=5 // pred_region
      %s247 = ssub.s32 %s14, 1
      %p248 = scmp.lt.s32.totalorder %s19, 1
      %s249 = scalar_select %p248, %s19, 1
      %s250 = smul.addr %s249, 54
      %s251 = smul.addr %s250, 4
      %s252 = scalar_lea.vmem %s0, %s251
      %p253 = pneg %p40
      %p254 = pneg %p37
      %p255 = pneg %p61
      %p256 = pneg %p58
      %p257 = pneg %p82
      %p258 = pneg %p79
      %p259 = pneg %p103
      %p260 = pneg %p100
      %p261 = pneg %p124
      %p262 = pneg %p121
      %p263 = pneg %p150
      %p264 = pneg %p147
      %p265 = scmp.lt.s32.totalorder %s19, 1
      %s266 = scalar_select %p265, %s19, 1
      %s267 = smul.addr %s266, 54
      %s268 = smul.addr %s267, 4
      %s269 = scalar_lea.vmem %s5, %s268
      %p270 = pneg %p176
      %p271 = pneg %p173
      %p272 = scmp.lt.s32.totalorder %s19, 1
      %s273 = scalar_select %p272, %s19, 1
      %s274 = smul.addr %s273, 8
      %s275 = scalar_lea.vmem %s6, %s274
      %p276 = pneg %p202
      %p277 = pneg %p199
      %p278 = scmp.lt.s32.totalorder %s19, 1
      %s279 = scalar_select %p278, %s19, 1
      %s280 = smul.addr %s279, 8
      %s281 = scalar_lea.vmem %s7, %s280
      %p282 = scmp.lt.s32.totalorder %s19, 1
      %s283 = scalar_select %p282, %s19, 1
      %s284 = smul.addr %s283, 54
      %s285 = smul.addr %s284, 4
      %s286 = scalar_lea.vmem %s0, %s285
      %p287 = scmp.lt.s32.totalorder %s19, 1
      %s288 = scalar_select %p287, %s19, 1
      %s289 = smul.addr %s288, 54
      %s290 = smul.addr %s289, 4
      %s291 = scalar_lea.vmem %s5, %s290
      %p292 = scmp.lt.s32.totalorder %s19, 1
      %s293 = scalar_select %p292, %s19, 1
      %s294 = smul.addr %s293, 8
      %s295 = scalar_lea.vmem %s6, %s294
      %p296 = scmp.lt.s32.totalorder %s19, 1
      %s297 = scalar_select %p296, %s19, 1
      %s298 = smul.addr %s297, 8
      %s299 = scalar_lea.vmem %s7, %s298
      %s301 = scalar_lea.vmem %s286, 12
      %v302 = vld [vmem:[%s301] sm:$0xf]
      %v303 = vld [vmem:[%s301 + $0x4] sm:$0xf]
      %v304 = vld [vmem:[%s301 + $0x8] sm:$0x1]
      %v305 = vld [vmem:[%s301 + $0xc] sm:$0xf]
      %v306 = vld [vmem:[%s301 + $0x10] sm:$0xf]
      %v307 = vld [vmem:[%s301 + $0x14] sm:$0x1]
      %v308 = vld [vmem:[%s301 + $0x18] sm:$0xf]
      %v309 = vld [vmem:[%s301 + $0x1c] sm:$0xf]
      %v310 = vld [vmem:[%s301 + $0x20] sm:$0x1]
      %v311 = vld [vmem:[%s301 + $0x24] sm:$0xf]
      %v312 = vld [vmem:[%s301 + $0x28] sm:$0xf]
      %v313 = vld [vmem:[%s301 + $0x2c] sm:$0x1]
      %v314 = vld [vmem:[%s301 + $0x30] sm:$0xf]
      %v315 = vld [vmem:[%s301 + $0x34] sm:$0xf]
      %v316 = vld [vmem:[%s301 + $0x38] sm:$0x1]
      %v317 = vld [vmem:[%s301 + $0x3c] sm:$0xf]
      %v318 = vld [vmem:[%s301 + $0x40] sm:$0xf]
      %v319 = vld [vmem:[%s301 + $0x44] sm:$0x1]
      %v320 = vld [vmem:[%s301 + $0x48] sm:$0xf]
      %v321 = vld [vmem:[%s301 + $0x4c] sm:$0xf]
      %v322 = vld [vmem:[%s301 + $0x50] sm:$0x1]
      %v323 = vld [vmem:[%s301 + $0x54] sm:$0xf]
      %v324 = vld [vmem:[%s301 + $0x58] sm:$0xf]
      %v325 = vld [vmem:[%s301 + $0x5c] sm:$0x1]
      %v326 = vld [vmem:[%s301 + $0x60] sm:$0xf]
      %v327 = vld [vmem:[%s301 + $0x64] sm:$0xf]
      %v328 = vld [vmem:[%s301 + $0x68] sm:$0x1]
      %v329 = vld [vmem:[%s301 + $0x6c] sm:$0xf]
      %v330 = vld [vmem:[%s301 + $0x70] sm:$0xf]
      %v331 = vld [vmem:[%s301 + $0x74] sm:$0x1]
      %v332 = vld [vmem:[%s301 + $0x78] sm:$0xf]
      %v333 = vld [vmem:[%s301 + $0x7c] sm:$0xf]
      %v334 = vld [vmem:[%s301 + $0x80] sm:$0x1]
      %v335 = vld [vmem:[%s301 + $0x84] sm:$0xf]
      %v336 = vld [vmem:[%s301 + $0x88] sm:$0xf]
      %v337 = vld [vmem:[%s301 + $0x8c] sm:$0x1]
      %v338 = vld [vmem:[%s301 + $0x90] sm:$0xf]
      %v339 = vld [vmem:[%s301 + $0x94] sm:$0xf]
      %v340 = vld [vmem:[%s301 + $0x98] sm:$0x1]
      %v341 = vld [vmem:[%s301 + $0x9c] sm:$0xf]
      %v342 = vld [vmem:[%s301 + $0xa0] sm:$0xf]
      %v343 = vld [vmem:[%s301 + $0xa4] sm:$0x1]
      %v344 = vld [vmem:[%s301 + $0xa8] sm:$0xf]
      %v345 = vld [vmem:[%s301 + $0xac] sm:$0xf]
      %v346 = vld [vmem:[%s301 + $0xb0] sm:$0x1]
      %v347 = vld [vmem:[%s301 + $0xb4] sm:$0xf]
      %v348 = vld [vmem:[%s301 + $0xb8] sm:$0xf]
      %v349 = vld [vmem:[%s301 + $0xbc] sm:$0x1]
      %v350 = vunpack.c.l.bf16 %v302
      %v351 = vunpack.c.l.bf16 %v303
      %v352 = vunpack.c.l.bf16 %v304
      %v353 = vunpack.c.l.bf16 %v305
      %v354 = vunpack.c.l.bf16 %v306
      %v355 = vunpack.c.l.bf16 %v307
      %v356 = vunpack.c.l.bf16 %v308
      %v357 = vunpack.c.l.bf16 %v309
      %v358 = vunpack.c.l.bf16 %v310
      %v359 = vunpack.c.l.bf16 %v311
      %v360 = vunpack.c.l.bf16 %v312
      %v361 = vunpack.c.l.bf16 %v313
      %v362 = vunpack.c.l.bf16 %v314
      %v363 = vunpack.c.l.bf16 %v315
      %v364 = vunpack.c.l.bf16 %v316
      %v365 = vunpack.c.l.bf16 %v317
      %v366 = vunpack.c.l.bf16 %v318
      %v367 = vunpack.c.l.bf16 %v319
      %v368 = vunpack.c.l.bf16 %v320
      %v369 = vunpack.c.l.bf16 %v321
      %v370 = vunpack.c.l.bf16 %v322
      %v371 = vunpack.c.l.bf16 %v323
      %v372 = vunpack.c.l.bf16 %v324
      %v373 = vunpack.c.l.bf16 %v325
      %v374 = vunpack.c.l.bf16 %v326
      %v375 = vunpack.c.l.bf16 %v327
      %v376 = vunpack.c.l.bf16 %v328
      %v377 = vunpack.c.l.bf16 %v329
      %v378 = vunpack.c.l.bf16 %v330
      %v379 = vunpack.c.l.bf16 %v331
      %v380 = vunpack.c.l.bf16 %v332
      %v381 = vunpack.c.l.bf16 %v333
      %v382 = vunpack.c.l.bf16 %v334
      %v383 = vunpack.c.l.bf16 %v335
      %v384 = vunpack.c.l.bf16 %v336
      %v385 = vunpack.c.l.bf16 %v337
      %v386 = vunpack.c.l.bf16 %v338
      %v387 = vunpack.c.l.bf16 %v339
      %v388 = vunpack.c.l.bf16 %v340
      %v389 = vunpack.c.l.bf16 %v341
      %v390 = vunpack.c.l.bf16 %v342
      %v391 = vunpack.c.l.bf16 %v343
      %v392 = vunpack.c.l.bf16 %v344
      %v393 = vunpack.c.l.bf16 %v345
      %v394 = vunpack.c.l.bf16 %v346
      %v395 = vunpack.c.l.bf16 %v347
      %v396 = vunpack.c.l.bf16 %v348
      %v397 = vunpack.c.l.bf16 %v349
      %v398 = vld [vmem:[%s1] sm:$0x1]
      %v400 = vperm.slane %v398, 0
      %v402 = vmul.f32 %v350, %v400
      %v403 = vmul.f32 %v351, %v400
      %v404 = vmul.f32 %v352, %v400
      %v405 = vmul.f32 %v353, %v400
      %v406 = vmul.f32 %v354, %v400
      %v407 = vmul.f32 %v355, %v400
      %v408 = vmul.f32 %v356, %v400
      %v409 = vmul.f32 %v357, %v400
      %v410 = vmul.f32 %v358, %v400
      %v411 = vmul.f32 %v359, %v400
      %v412 = vmul.f32 %v360, %v400
      %v413 = vmul.f32 %v361, %v400
      %v414 = vmul.f32 %v362, %v400
      %v415 = vmul.f32 %v363, %v400
      %v416 = vmul.f32 %v364, %v400
      %v417 = vmul.f32 %v365, %v400
      %v418 = vmul.f32 %v366, %v400
      %v419 = vmul.f32 %v367, %v400
      %v420 = vmul.f32 %v368, %v400
      %v421 = vmul.f32 %v369, %v400
      %v422 = vmul.f32 %v370, %v400
      %v423 = vmul.f32 %v371, %v400
      %v424 = vmul.f32 %v372, %v400
      %v425 = vmul.f32 %v373, %v400
      %v426 = vmul.f32 %v374, %v400
      %v427 = vmul.f32 %v375, %v400
      %v428 = vmul.f32 %v376, %v400
      %v429 = vmul.f32 %v377, %v400
      %v430 = vmul.f32 %v378, %v400
      %v431 = vmul.f32 %v379, %v400
      %v432 = vmul.f32 %v380, %v400
      %v433 = vmul.f32 %v381, %v400
      %v434 = vmul.f32 %v382, %v400
      %v435 = vmul.f32 %v383, %v400
      %v436 = vmul.f32 %v384, %v400
      %v437 = vmul.f32 %v385, %v400
      %v438 = vmul.f32 %v386, %v400
      %v439 = vmul.f32 %v387, %v400
      %v440 = vmul.f32 %v388, %v400
      %v441 = vmul.f32 %v389, %v400
      %v442 = vmul.f32 %v390, %v400
      %v443 = vmul.f32 %v391, %v400
      %v444 = vmul.f32 %v392, %v400
      %v445 = vmul.f32 %v393, %v400
      %v446 = vmul.f32 %v394, %v400
      %v447 = vmul.f32 %v395, %v400
      %v448 = vmul.f32 %v396, %v400
      %v449 = vmul.f32 %v397, %v400
      %v450 = vld [vmem:[%s2] sm:$0x1]
      %v452 = vperm.slane %v450, 0
      %v454 = vadd.f32 %v402, %v452
      %v455 = vadd.f32 %v403, %v452
      %v456 = vadd.f32 %v404, %v452
      %v457 = vadd.f32 %v405, %v452
      %v458 = vadd.f32 %v406, %v452
      %v459 = vadd.f32 %v407, %v452
      %v460 = vadd.f32 %v408, %v452
      %v461 = vadd.f32 %v409, %v452
      %v462 = vadd.f32 %v410, %v452
      %v463 = vadd.f32 %v411, %v452
      %v464 = vadd.f32 %v412, %v452
      %v465 = vadd.f32 %v413, %v452
      %v466 = vadd.f32 %v414, %v452
      %v467 = vadd.f32 %v415, %v452
      %v468 = vadd.f32 %v416, %v452
      %v469 = vadd.f32 %v417, %v452
      %v470 = vadd.f32 %v418, %v452
      %v471 = vadd.f32 %v419, %v452
      %v472 = vadd.f32 %v420, %v452
      %v473 = vadd.f32 %v421, %v452
      %v474 = vadd.f32 %v422, %v452
      %v475 = vadd.f32 %v423, %v452
      %v476 = vadd.f32 %v424, %v452
      %v477 = vadd.f32 %v425, %v452
      %v478 = vadd.f32 %v426, %v452
      %v479 = vadd.f32 %v427, %v452
      %v480 = vadd.f32 %v428, %v452
      %v481 = vadd.f32 %v429, %v452
      %v482 = vadd.f32 %v430, %v452
      %v483 = vadd.f32 %v431, %v452
      %v484 = vadd.f32 %v432, %v452
      %v485 = vadd.f32 %v433, %v452
      %v486 = vadd.f32 %v434, %v452
      %v487 = vadd.f32 %v435, %v452
      %v488 = vadd.f32 %v436, %v452
      %v489 = vadd.f32 %v437, %v452
      %v490 = vadd.f32 %v438, %v452
      %v491 = vadd.f32 %v439, %v452
      %v492 = vadd.f32 %v440, %v452
      %v493 = vadd.f32 %v441, %v452
      %v494 = vadd.f32 %v442, %v452
      %v495 = vadd.f32 %v443, %v452
      %v496 = vadd.f32 %v444, %v452
      %v497 = vadd.f32 %v445, %v452
      %v498 = vadd.f32 %v446, %v452
      %v499 = vadd.f32 %v447, %v452
      %v500 = vadd.f32 %v448, %v452
      %v501 = vadd.f32 %v449, %v452
      %vm502 = vcmask 27648
      %503 = vst.msk [vmem:[#allocation2] sm:$0xf] %vm502, 0
      %504 = vst.msk [vmem:[#allocation2 + $0x4] sm:$0xf] %vm502, 0
      %vm505 = vcmask 24576
      %506 = vst.msk [vmem:[#allocation2 + $0x8] sm:$0x1] %vm505, 0
      %507 = vst.msk [vmem:[#allocation2 + $0xc] sm:$0xf] %vm502, 0
      %508 = vst.msk [vmem:[#allocation2 + $0x10] sm:$0xf] %vm502, 0
      %509 = vst.msk [vmem:[#allocation2 + $0x14] sm:$0x1] %vm505, 0
      %510 = vst.msk [vmem:[#allocation2 + $0x18] sm:$0xf] %vm502, 0
      %511 = vst.msk [vmem:[#allocation2 + $0x1c] sm:$0xf] %vm502, 0
      %512 = vst.msk [vmem:[#allocation2 + $0x20] sm:$0x1] %vm505, 0
      %513 = vst.msk [vmem:[#allocation2 + $0x24] sm:$0xf] %vm502, 0
      %514 = vst.msk [vmem:[#allocation2 + $0x28] sm:$0xf] %vm502, 0
      %515 = vst.msk [vmem:[#allocation2 + $0x2c] sm:$0x1] %vm505, 0
      %516 = vst.msk [vmem:[#allocation2 + $0x30] sm:$0xf] %vm502, 0
      %517 = vst.msk [vmem:[#allocation2 + $0x34] sm:$0xf] %vm502, 0
      %518 = vst.msk [vmem:[#allocation2 + $0x38] sm:$0x1] %vm505, 0
      %519 = vst.msk [vmem:[#allocation2 + $0x3c] sm:$0xf] %vm502, 0
      %520 = vst.msk [vmem:[#allocation2 + $0x40] sm:$0xf] %vm502, 0
      %521 = vst.msk [vmem:[#allocation2 + $0x44] sm:$0x1] %vm505, 0
      %522 = vst.msk [vmem:[#allocation2 + $0x48] sm:$0xf] %vm502, 0
      %523 = vst.msk [vmem:[#allocation2 + $0x4c] sm:$0xf] %vm502, 0
      %524 = vst.msk [vmem:[#allocation2 + $0x50] sm:$0x1] %vm505, 0
      %525 = vst.msk [vmem:[#allocation2 + $0x54] sm:$0xf] %vm502, 0
      %526 = vst.msk [vmem:[#allocation2 + $0x58] sm:$0xf] %vm502, 0
      %527 = vst.msk [vmem:[#allocation2 + $0x5c] sm:$0x1] %vm505, 0
      %528 = vst.msk [vmem:[#allocation2 + $0x60] sm:$0xf] %vm502, 0
      %529 = vst.msk [vmem:[#allocation2 + $0x64] sm:$0xf] %vm502, 0
      %530 = vst.msk [vmem:[#allocation2 + $0x68] sm:$0x1] %vm505, 0
      %531 = vst.msk [vmem:[#allocation2 + $0x6c] sm:$0xf] %vm502, 0
      %532 = vst.msk [vmem:[#allocation2 + $0x70] sm:$0xf] %vm502, 0
      %533 = vst.msk [vmem:[#allocation2 + $0x74] sm:$0x1] %vm505, 0
      %534 = vst.msk [vmem:[#allocation2 + $0x78] sm:$0xf] %vm502, 0
      %535 = vst.msk [vmem:[#allocation2 + $0x7c] sm:$0xf] %vm502, 0
      %536 = vst.msk [vmem:[#allocation2 + $0x80] sm:$0x1] %vm505, 0
      %537 = vst.msk [vmem:[#allocation2 + $0x84] sm:$0xf] %vm502, 0
      %538 = vst.msk [vmem:[#allocation2 + $0x88] sm:$0xf] %vm502, 0
      %539 = vst.msk [vmem:[#allocation2 + $0x8c] sm:$0x1] %vm505, 0
      %540 = vst.msk [vmem:[#allocation2 + $0x90] sm:$0xf] %vm502, 0
      %541 = vst.msk [vmem:[#allocation2 + $0x94] sm:$0xf] %vm502, 0
      %542 = vst.msk [vmem:[#allocation2 + $0x98] sm:$0x1] %vm505, 0
      %543 = vst.msk [vmem:[#allocation2 + $0x9c] sm:$0xf] %vm502, 0
      %544 = vst.msk [vmem:[#allocation2 + $0xa0] sm:$0xf] %vm502, 0
      %545 = vst.msk [vmem:[#allocation2 + $0xa4] sm:$0x1] %vm505, 0
      %546 = vst.msk [vmem:[#allocation2 + $0xa8] sm:$0xf] %vm502, 0
      %547 = vst.msk [vmem:[#allocation2 + $0xac] sm:$0xf] %vm502, 0
      %548 = vst.msk [vmem:[#allocation2 + $0xb0] sm:$0x1] %vm505, 0
      %549 = vst.msk [vmem:[#allocation2 + $0xb4] sm:$0xf] %vm502, 0
      %550 = vst.msk [vmem:[#allocation2 + $0xb8] sm:$0xf] %vm502, 0
      %551 = vst.msk [vmem:[#allocation2 + $0xbc] sm:$0x1] %vm505, 0
      %552 = vst.msk [vmem:[#allocation2 + $0xc0] sm:$0xf] %vm502, 0
      %553 = vst.msk [vmem:[#allocation2 + $0xc4] sm:$0xf] %vm502, 0
      %554 = vst.msk [vmem:[#allocation2 + $0xc8] sm:$0x1] %vm505, 0
      %555 = vst.msk [vmem:[#allocation2 + $0xcc] sm:$0xf] %vm502, 0
      %556 = vst.msk [vmem:[#allocation2 + $0xd0] sm:$0xf] %vm502, 0
      %557 = vst.msk [vmem:[#allocation2 + $0xd4] sm:$0x1] %vm505, 0
      %v558 = vpack.c.bf16 %v454, %v454
      %v559 = vpack.c.bf16 %v455, %v455
      %v560 = vpack.c.bf16 %v456, %v456
      %v561 = vpack.c.bf16 %v457, %v457
      %v562 = vpack.c.bf16 %v458, %v458
      %v563 = vpack.c.bf16 %v459, %v459
      %v564 = vpack.c.bf16 %v460, %v460
      %v565 = vpack.c.bf16 %v461, %v461
      %v566 = vpack.c.bf16 %v462, %v462
      %v567 = vpack.c.bf16 %v463, %v463
      %v568 = vpack.c.bf16 %v464, %v464
      %v569 = vpack.c.bf16 %v465, %v465
      %v570 = vpack.c.bf16 %v466, %v466
      %v571 = vpack.c.bf16 %v467, %v467
      %v572 = vpack.c.bf16 %v468, %v468
      %v573 = vpack.c.bf16 %v469, %v469
      %v574 = vpack.c.bf16 %v470, %v470
      %v575 = vpack.c.bf16 %v471, %v471
      %v576 = vpack.c.bf16 %v472, %v472
      %v577 = vpack.c.bf16 %v473, %v473
      %v578 = vpack.c.bf16 %v474, %v474
      %v579 = vpack.c.bf16 %v475, %v475
      %v580 = vpack.c.bf16 %v476, %v476
      %v581 = vpack.c.bf16 %v477, %v477
      %v582 = vpack.c.bf16 %v478, %v478
      %v583 = vpack.c.bf16 %v479, %v479
      %v584 = vpack.c.bf16 %v480, %v480
      %v585 = vpack.c.bf16 %v481, %v481
      %v586 = vpack.c.bf16 %v482, %v482
      %v587 = vpack.c.bf16 %v483, %v483
      %v588 = vpack.c.bf16 %v484, %v484
      %v589 = vpack.c.bf16 %v485, %v485
      %v590 = vpack.c.bf16 %v486, %v486
      %v591 = vpack.c.bf16 %v487, %v487
      %v592 = vpack.c.bf16 %v488, %v488
      %v593 = vpack.c.bf16 %v489, %v489
      %v594 = vpack.c.bf16 %v490, %v490
      %v595 = vpack.c.bf16 %v491, %v491
      %v596 = vpack.c.bf16 %v492, %v492
      %v597 = vpack.c.bf16 %v493, %v493
      %v598 = vpack.c.bf16 %v494, %v494
      %v599 = vpack.c.bf16 %v495, %v495
      %v600 = vpack.c.bf16 %v496, %v496
      %v601 = vpack.c.bf16 %v497, %v497
      %v602 = vpack.c.bf16 %v498, %v498
      %v603 = vpack.c.bf16 %v499, %v499
      %v604 = vpack.c.bf16 %v500, %v500
      %v605 = vpack.c.bf16 %v501, %v501
      %s606 = scalar_lea.vmem [#allocation2], 12
      %vm607 = vcmask 27648
      %vm608 = vsmask.f32 7938
      %vm609 = vmand %vm607, %vm608
      %v610 = vld [vmem:[%s606] sm:$0xf]
      %v611 = vsel %vm609, %v558, %v610
      %612 = vst [vmem:[%s606] sm:$0xf] %v611
      %613 = vst.msk [vmem:[%s606 + $0x4] sm:$0xf] %vm502, %v559
      %vm614 = vcmask 24576
      %vm615 = vsmask.f32 256
      %vm616 = vmand %vm614, %vm615
      %v617 = vld [vmem:[%s606 + $0x8] sm:$0x1]
      %v618 = vsel %vm616, %v560, %v617
      %619 = vst [vmem:[%s606 + $0x8] sm:$0x1] %v618
      %v620 = vld [vmem:[%s606 + $0xc] sm:$0xf]
      %v621 = vsel %vm609, %v561, %v620
      %622 = vst [vmem:[%s606 + $0xc] sm:$0xf] %v621
      %623 = vst.msk [vmem:[%s606 + $0x10] sm:$0xf] %vm502, %v562
      %v624 = vld [vmem:[%s606 + $0x14] sm:$0x1]
      %v625 = vsel %vm616, %v563, %v624
      %626 = vst [vmem:[%s606 + $0x14] sm:$0x1] %v625
      %v627 = vld [vmem:[%s606 + $0x18] sm:$0xf]
      %v628 = vsel %vm609, %v564, %v627
      %629 = vst [vmem:[%s606 + $0x18] sm:$0xf] %v628
      %630 = vst.msk [vmem:[%s606 + $0x1c] sm:$0xf] %vm502, %v565
      %v631 = vld [vmem:[%s606 + $0x20] sm:$0x1]
      %v632 = vsel %vm616, %v566, %v631
      %633 = vst [vmem:[%s606 + $0x20] sm:$0x1] %v632
      %v634 = vld [vmem:[%s606 + $0x24] sm:$0xf]
      %v635 = vsel %vm609, %v567, %v634
      %636 = vst [vmem:[%s606 + $0x24] sm:$0xf] %v635
      %637 = vst.msk [vmem:[%s606 + $0x28] sm:$0xf] %vm502, %v568
      %v638 = vld [vmem:[%s606 + $0x2c] sm:$0x1]
      %v639 = vsel %vm616, %v569, %v638
      %640 = vst [vmem:[%s606 + $0x2c] sm:$0x1] %v639
      %v641 = vld [vmem:[%s606 + $0x30] sm:$0xf]
      %v642 = vsel %vm609, %v570, %v641
      %643 = vst [vmem:[%s606 + $0x30] sm:$0xf] %v642
      %644 = vst.msk [vmem:[%s606 + $0x34] sm:$0xf] %vm502, %v571
      %v645 = vld [vmem:[%s606 + $0x38] sm:$0x1]
      %v646 = vsel %vm616, %v572, %v645
      %647 = vst [vmem:[%s606 + $0x38] sm:$0x1] %v646
      %v648 = vld [vmem:[%s606 + $0x3c] sm:$0xf]
      %v649 = vsel %vm609, %v573, %v648
      %650 = vst [vmem:[%s606 + $0x3c] sm:$0xf] %v649
      %651 = vst.msk [vmem:[%s606 + $0x40] sm:$0xf] %vm502, %v574
      %v652 = vld [vmem:[%s606 + $0x44] sm:$0x1]
      %v653 = vsel %vm616, %v575, %v652
      %654 = vst [vmem:[%s606 + $0x44] sm:$0x1] %v653
      %v655 = vld [vmem:[%s606 + $0x48] sm:$0xf]
      %v656 = vsel %vm609, %v576, %v655
      %657 = vst [vmem:[%s606 + $0x48] sm:$0xf] %v656
      %658 = vst.msk [vmem:[%s606 + $0x4c] sm:$0xf] %vm502, %v577
      %v659 = vld [vmem:[%s606 + $0x50] sm:$0x1]
      %v660 = vsel %vm616, %v578, %v659
      %661 = vst [vmem:[%s606 + $0x50] sm:$0x1] %v660
      %v662 = vld [vmem:[%s606 + $0x54] sm:$0xf]
      %v663 = vsel %vm609, %v579, %v662
      %664 = vst [vmem:[%s606 + $0x54] sm:$0xf] %v663
      %665 = vst.msk [vmem:[%s606 + $0x58] sm:$0xf] %vm502, %v580
      %v666 = vld [vmem:[%s606 + $0x5c] sm:$0x1]
      %v667 = vsel %vm616, %v581, %v666
      %668 = vst [vmem:[%s606 + $0x5c] sm:$0x1] %v667
      %v669 = vld [vmem:[%s606 + $0x60] sm:$0xf]
      %v670 = vsel %vm609, %v582, %v669
      %671 = vst [vmem:[%s606 + $0x60] sm:$0xf] %v670
      %672 = vst.msk [vmem:[%s606 + $0x64] sm:$0xf] %vm502, %v583
      %v673 = vld [vmem:[%s606 + $0x68] sm:$0x1]
      %v674 = vsel %vm616, %v584, %v673
      %675 = vst [vmem:[%s606 + $0x68] sm:$0x1] %v674
      %v676 = vld [vmem:[%s606 + $0x6c] sm:$0xf]
      %v677 = vsel %vm609, %v585, %v676
      %678 = vst [vmem:[%s606 + $0x6c] sm:$0xf] %v677
      %679 = vst.msk [vmem:[%s606 + $0x70] sm:$0xf] %vm502, %v586
      %v680 = vld [vmem:[%s606 + $0x74] sm:$0x1]
      %v681 = vsel %vm616, %v587, %v680
      %682 = vst [vmem:[%s606 + $0x74] sm:$0x1] %v681
      %v683 = vld [vmem:[%s606 + $0x78] sm:$0xf]
      %v684 = vsel %vm609, %v588, %v683
      %685 = vst [vmem:[%s606 + $0x78] sm:$0xf] %v684
      %686 = vst.msk [vmem:[%s606 + $0x7c] sm:$0xf] %vm502, %v589
      %v687 = vld [vmem:[%s606 + $0x80] sm:$0x1]
      %v688 = vsel %vm616, %v590, %v687
      %689 = vst [vmem:[%s606 + $0x80] sm:$0x1] %v688
      %v690 = vld [vmem:[%s606 + $0x84] sm:$0xf]
      %v691 = vsel %vm609, %v591, %v690
      %692 = vst [vmem:[%s606 + $0x84] sm:$0xf] %v691
      %693 = vst.msk [vmem:[%s606 + $0x88] sm:$0xf] %vm502, %v592
      %v694 = vld [vmem:[%s606 + $0x8c] sm:$0x1]
      %v695 = vsel %vm616, %v593, %v694
      %696 = vst [vmem:[%s606 + $0x8c] sm:$0x1] %v695
      %v697 = vld [vmem:[%s606 + $0x90] sm:$0xf]
      %v698 = vsel %vm609, %v594, %v697
      %699 = vst [vmem:[%s606 + $0x90] sm:$0xf] %v698
      %700 = vst.msk [vmem:[%s606 + $0x94] sm:$0xf] %vm502, %v595
      %v701 = vld [vmem:[%s606 + $0x98] sm:$0x1]
      %v702 = vsel %vm616, %v596, %v701
      %703 = vst [vmem:[%s606 + $0x98] sm:$0x1] %v702
      %v704 = vld [vmem:[%s606 + $0x9c] sm:$0xf]
      %v705 = vsel %vm609, %v597, %v704
      %706 = vst [vmem:[%s606 + $0x9c] sm:$0xf] %v705
      %707 = vst.msk [vmem:[%s606 + $0xa0] sm:$0xf] %vm502, %v598
      %v708 = vld [vmem:[%s606 + $0xa4] sm:$0x1]
      %v709 = vsel %vm616, %v599, %v708
      %710 = vst [vmem:[%s606 + $0xa4] sm:$0x1] %v709
      %v711 = vld [vmem:[%s606 + $0xa8] sm:$0xf]
      %v712 = vsel %vm609, %v600, %v711
      %713 = vst [vmem:[%s606 + $0xa8] sm:$0xf] %v712
      %714 = vst.msk [vmem:[%s606 + $0xac] sm:$0xf] %vm502, %v601
      %v715 = vld [vmem:[%s606 + $0xb0] sm:$0x1]
      %v716 = vsel %vm616, %v602, %v715
      %717 = vst [vmem:[%s606 + $0xb0] sm:$0x1] %v716
      %v718 = vld [vmem:[%s606 + $0xb4] sm:$0xf]
      %v719 = vsel %vm609, %v603, %v718
      %720 = vst [vmem:[%s606 + $0xb4] sm:$0xf] %v719
      %721 = vst.msk [vmem:[%s606 + $0xb8] sm:$0xf] %vm502, %v604
      %v722 = vld [vmem:[%s606 + $0xbc] sm:$0x1]
      %v723 = vsel %vm616, %v605, %v722
      %724 = vst [vmem:[%s606 + $0xbc] sm:$0x1] %v723
      %v725 = vld [vmem:[#allocation2] sm:$0xf]
      %v726 = vld [vmem:[#allocation2 + $0x4] sm:$0xf]
      %v727 = vld [vmem:[#allocation2 + $0x8] sm:$0x1]
      %v728 = vld [vmem:[#allocation2 + $0xc] sm:$0xf]
      %v729 = vld [vmem:[#allocation2 + $0x10] sm:$0xf]
      %v730 = vld [vmem:[#allocation2 + $0x14] sm:$0x1]
      %v731 = vld [vmem:[#allocation2 + $0x18] sm:$0xf]
      %v732 = vld [vmem:[#allocation2 + $0x1c] sm:$0xf]
      %v733 = vld [vmem:[#allocation2 + $0x20] sm:$0x1]
      %v734 = vld [vmem:[#allocation2 + $0x24] sm:$0xf]
      %v735 = vld [vmem:[#allocation2 + $0x28] sm:$0xf]
      %v736 = vld [vmem:[#allocation2 + $0x2c] sm:$0x1]
      %v737 = vld [vmem:[#allocation2 + $0x30] sm:$0xf]
      %v738 = vld [vmem:[#allocation2 + $0x34] sm:$0xf]
      %v739 = vld [vmem:[#allocation2 + $0x38] sm:$0x1]
      %v740 = vld [vmem:[#allocation2 + $0x3c] sm:$0xf]
      %v741 = vld [vmem:[#allocation2 + $0x40] sm:$0xf]
      %v742 = vld [vmem:[#allocation2 + $0x44] sm:$0x1]
      %v743 = vld [vmem:[#allocation2 + $0x48] sm:$0xf]
      %v744 = vld [vmem:[#allocation2 + $0x4c] sm:$0xf]
      %v745 = vld [vmem:[#allocation2 + $0x50] sm:$0x1]
      %v746 = vld [vmem:[#allocation2 + $0x54] sm:$0xf]
      %v747 = vld [vmem:[#allocation2 + $0x58] sm:$0xf]
      %v748 = vld [vmem:[#allocation2 + $0x5c] sm:$0x1]
      %v749 = vld [vmem:[#allocation2 + $0x60] sm:$0xf]
      %v750 = vld [vmem:[#allocation2 + $0x64] sm:$0xf]
      %v751 = vld [vmem:[#allocation2 + $0x68] sm:$0x1]
      %v752 = vld [vmem:[#allocation2 + $0x6c] sm:$0xf]
      %v753 = vld [vmem:[#allocation2 + $0x70] sm:$0xf]
      %v754 = vld [vmem:[#allocation2 + $0x74] sm:$0x1]
      %v755 = vld [vmem:[#allocation2 + $0x78] sm:$0xf]
      %v756 = vld [vmem:[#allocation2 + $0x7c] sm:$0xf]
      %v757 = vld [vmem:[#allocation2 + $0x80] sm:$0x1]
      %v758 = vld [vmem:[#allocation2 + $0x84] sm:$0xf]
      %v759 = vld [vmem:[#allocation2 + $0x88] sm:$0xf]
      %v760 = vld [vmem:[#allocation2 + $0x8c] sm:$0x1]
      %v761 = vld [vmem:[#allocation2 + $0x90] sm:$0xf]
      %v762 = vld [vmem:[#allocation2 + $0x94] sm:$0xf]
      %v763 = vld [vmem:[#allocation2 + $0x98] sm:$0x1]
      %v764 = vld [vmem:[#allocation2 + $0x9c] sm:$0xf]
      %v765 = vld [vmem:[#allocation2 + $0xa0] sm:$0xf]
      %v766 = vld [vmem:[#allocation2 + $0xa4] sm:$0x1]
      %v767 = vld [vmem:[#allocation2 + $0xa8] sm:$0xf]
      %v768 = vld [vmem:[#allocation2 + $0xac] sm:$0xf]
      %v769 = vld [vmem:[#allocation2 + $0xb0] sm:$0x1]
      %v770 = vld [vmem:[#allocation2 + $0xb4] sm:$0xf]
      %v771 = vld [vmem:[#allocation2 + $0xb8] sm:$0xf]
      %v772 = vld [vmem:[#allocation2 + $0xbc] sm:$0x1]
      %v773 = vld [vmem:[#allocation2 + $0xc0] sm:$0xf]
      %v774 = vld [vmem:[#allocation2 + $0xc4] sm:$0xf]
      %v775 = vld [vmem:[#allocation2 + $0xc8] sm:$0x1]
      %v776 = vld [vmem:[#allocation2 + $0xcc] sm:$0xf]
      %v777 = vld [vmem:[#allocation2 + $0xd0] sm:$0xf]
      %v778 = vld [vmem:[#allocation2 + $0xd4] sm:$0x1]
      %v811 = vunpack.c.l.b16 %v725
      %v812 = vunpack.c.l.b16 %v726
      %v813 = vunpack.c.l.b16 %v728
      %v814 = vunpack.c.l.b16 %v729
      %v815 = vunpack.c.l.b16 %v731
      %v816 = vunpack.c.l.b16 %v732
      %v817 = vunpack.c.l.b16 %v734
      %v818 = vunpack.c.l.b16 %v735
      %v819 = vunpack.c.l.b16 %v737
      %v820 = vunpack.c.l.b16 %v738
      %v821 = vunpack.c.l.b16 %v740
      %v822 = vunpack.c.l.b16 %v741
      %v823 = vunpack.c.l.b16 %v743
      %v824 = vunpack.c.l.b16 %v744
      %v825 = vunpack.c.l.b16 %v746
      %v826 = vunpack.c.l.b16 %v747
      %v827 = vunpack.c.l.b16 %v749
      %v828 = vunpack.c.l.b16 %v750
      %v829 = vunpack.c.l.b16 %v752
      %v830 = vunpack.c.l.b16 %v753
      %v831 = vunpack.c.l.b16 %v755
      %v832 = vunpack.c.l.b16 %v756
      %v833 = vunpack.c.l.b16 %v758
      %v834 = vunpack.c.l.b16 %v759
      %v835 = vunpack.c.l.b16 %v761
      %v836 = vunpack.c.l.b16 %v762
      %v837 = vunpack.c.l.b16 %v764
      %v838 = vunpack.c.l.b16 %v765
      %v839 = vunpack.c.l.b16 %v767
      %v840 = vunpack.c.l.b16 %v768
      %v841 = vunpack.c.l.b16 %v770
      %v842 = vunpack.c.l.b16 %v771
      %v843 = vpack.c.b16 %v812, %v811
      %v844 = vpack.c.b16 %v814, %v813
      %v845 = vpack.c.b16 %v816, %v815
      %v846 = vpack.c.b16 %v818, %v817
      %v847 = vpack.c.b16 %v820, %v819
      %v848 = vpack.c.b16 %v822, %v821
      %v849 = vpack.c.b16 %v824, %v823
      %v850 = vpack.c.b16 %v826, %v825
      %v851 = vpack.c.b16 %v828, %v827
      %v852 = vpack.c.b16 %v830, %v829
      %v853 = vpack.c.b16 %v832, %v831
      %v854 = vpack.c.b16 %v834, %v833
      %v855 = vpack.c.b16 %v836, %v835
      %v856 = vpack.c.b16 %v838, %v837
      %v857 = vpack.c.b16 %v840, %v839
      %v858 = vpack.c.b16 %v842, %v841
      %v875 = vunpack.c.l.b16 %v727
      %v876 = vunpack.c.l.b16 %v730
      %v877 = vunpack.c.l.b16 %v733
      %v878 = vunpack.c.l.b16 %v736
      %v879 = vunpack.c.l.b16 %v739
      %v880 = vunpack.c.l.b16 %v742
      %v881 = vunpack.c.l.b16 %v745
      %v882 = vunpack.c.l.b16 %v748
      %v883 = vunpack.c.l.b16 %v751
      %v884 = vunpack.c.l.b16 %v754
      %v885 = vunpack.c.l.b16 %v757
      %v886 = vunpack.c.l.b16 %v760
      %v887 = vunpack.c.l.b16 %v763
      %v888 = vunpack.c.l.b16 %v766
      %v889 = vunpack.c.l.b16 %v769
      %v890 = vunpack.c.l.b16 %v772
      %v891 = vpack.c.b16 %v875, %v875
      %v892 = vpack.c.b16 %v876, %v876
      %v893 = vpack.c.b16 %v877, %v877
      %v894 = vpack.c.b16 %v878, %v878
      %v895 = vpack.c.b16 %v879, %v879
      %v896 = vpack.c.b16 %v880, %v880
      %v897 = vpack.c.b16 %v881, %v881
      %v898 = vpack.c.b16 %v882, %v882
      %v899 = vpack.c.b16 %v883, %v883
      %v900 = vpack.c.b16 %v884, %v884
      %v901 = vpack.c.b16 %v885, %v885
      %v902 = vpack.c.b16 %v886, %v886
      %v903 = vpack.c.b16 %v887, %v887
      %v904 = vpack.c.b16 %v888, %v888
      %v905 = vpack.c.b16 %v889, %v889
      %v906 = vpack.c.b16 %v890, %v890
      %vm907 = vsmask.f32 7424
      %v909 = vshrl.u32 %v843, 16
      %v911 = vshll.u32 %v843, 16
      %v913 = vrot.slane %v911, 1
      %v914 = vor.u32 %v909, %v913
      %v916 = vshll.u32 %v891, 16
      %v918 = vrot.slane %v916, 1
      %v919 = vsel %vm907, %v914, %v918
      %v921 = vshrl.u32 %v844, 16
      %v923 = vshll.u32 %v844, 16
      %v925 = vrot.slane %v923, 1
      %v926 = vor.u32 %v921, %v925
      %v928 = vshll.u32 %v892, 16
      %v930 = vrot.slane %v928, 1
      %v931 = vsel %vm907, %v926, %v930
      %v933 = vshrl.u32 %v845, 16
      %v935 = vshll.u32 %v845, 16
      %v937 = vrot.slane %v935, 1
      %v938 = vor.u32 %v933, %v937
      %v940 = vshll.u32 %v893, 16
      %v942 = vrot.slane %v940, 1
      %v943 = vsel %vm907, %v938, %v942
      %v945 = vshrl.u32 %v846, 16
      %v947 = vshll.u32 %v846, 16
      %v949 = vrot.slane %v947, 1
      %v950 = vor.u32 %v945, %v949
      %v952 = vshll.u32 %v894, 16
      %v954 = vrot.slane %v952, 1
      %v955 = vsel %vm907, %v950, %v954
      %v957 = vshrl.u32 %v847, 16
      %v959 = vshll.u32 %v847, 16
      %v961 = vrot.slane %v959, 1
      %v962 = vor.u32 %v957, %v961
      %v964 = vshll.u32 %v895, 16
      %v966 = vrot.slane %v964, 1
      %v967 = vsel %vm907, %v962, %v966
      %v969 = vshrl.u32 %v848, 16
      %v971 = vshll.u32 %v848, 16
      %v973 = vrot.slane %v971, 1
      %v974 = vor.u32 %v969, %v973
      %v976 = vshll.u32 %v896, 16
      %v978 = vrot.slane %v976, 1
      %v979 = vsel %vm907, %v974, %v978
      %v981 = vshrl.u32 %v849, 16
      %v983 = vshll.u32 %v849, 16
      %v985 = vrot.slane %v983, 1
      %v986 = vor.u32 %v981, %v985
      %v988 = vshll.u32 %v897, 16
      %v990 = vrot.slane %v988, 1
      %v991 = vsel %vm907, %v986, %v990
      %v993 = vshrl.u32 %v850, 16
      %v995 = vshll.u32 %v850, 16
      %v997 = vrot.slane %v995, 1
      %v998 = vor.u32 %v993, %v997
      %v1000 = vshll.u32 %v898, 16
      %v1002 = vrot.slane %v1000, 1
      %v1003 = vsel %vm907, %v998, %v1002
      %v1005 = vshrl.u32 %v851, 16
      %v1007 = vshll.u32 %v851, 16
      %v1009 = vrot.slane %v1007, 1
      %v1010 = vor.u32 %v1005, %v1009
      %v1012 = vshll.u32 %v899, 16
      %v1014 = vrot.slane %v1012, 1
      %v1015 = vsel %vm907, %v1010, %v1014
      %v1017 = vshrl.u32 %v852, 16
      %v1019 = vshll.u32 %v852, 16
      %v1021 = vrot.slane %v1019, 1
      %v1022 = vor.u32 %v1017, %v1021
      %v1024 = vshll.u32 %v900, 16
      %v1026 = vrot.slane %v1024, 1
      %v1027 = vsel %vm907, %v1022, %v1026
      %v1029 = vshrl.u32 %v853, 16
      %v1031 = vshll.u32 %v853, 16
      %v1033 = vrot.slane %v1031, 1
      %v1034 = vor.u32 %v1029, %v1033
      %v1036 = vshll.u32 %v901, 16
      %v1038 = vrot.slane %v1036, 1
      %v1039 = vsel %vm907, %v1034, %v1038
      %v1041 = vshrl.u32 %v854, 16
      %v1043 = vshll.u32 %v854, 16
      %v1045 = vrot.slane %v1043, 1
      %v1046 = vor.u32 %v1041, %v1045
      %v1048 = vshll.u32 %v902, 16
      %v1050 = vrot.slane %v1048, 1
      %v1051 = vsel %vm907, %v1046, %v1050
      %v1053 = vshrl.u32 %v855, 16
      %v1055 = vshll.u32 %v855, 16
      %v1057 = vrot.slane %v1055, 1
      %v1058 = vor.u32 %v1053, %v1057
      %v1060 = vshll.u32 %v903, 16
      %v1062 = vrot.slane %v1060, 1
      %v1063 = vsel %vm907, %v1058, %v1062
      %v1065 = vshrl.u32 %v856, 16
      %v1067 = vshll.u32 %v856, 16
      %v1069 = vrot.slane %v1067, 1
      %v1070 = vor.u32 %v1065, %v1069
      %v1072 = vshll.u32 %v904, 16
      %v1074 = vrot.slane %v1072, 1
      %v1075 = vsel %vm907, %v1070, %v1074
      %v1077 = vshrl.u32 %v857, 16
      %v1079 = vshll.u32 %v857, 16
      %v1081 = vrot.slane %v1079, 1
      %v1082 = vor.u32 %v1077, %v1081
      %v1084 = vshll.u32 %v905, 16
      %v1086 = vrot.slane %v1084, 1
      %v1087 = vsel %vm907, %v1082, %v1086
      %v1089 = vshrl.u32 %v858, 16
      %v1091 = vshll.u32 %v858, 16
      %v1093 = vrot.slane %v1091, 1
      %v1094 = vor.u32 %v1089, %v1093
      %v1096 = vshll.u32 %v906, 16
      %v1098 = vrot.slane %v1096, 1
      %v1099 = vsel %vm907, %v1094, %v1098
      %1100 = vrot.lane.b32.xlu0 %v919, 4
      %v1101 = vpop.permute.xlu0 %1100
      %1102 = vrot.lane.b32.xlu0 %v931, 4
      %v1103 = vpop.permute.xlu0 %1102
      %1104 = vrot.lane.b32.xlu0 %v943, 4
      %v1105 = vpop.permute.xlu0 %1104
      %1106 = vrot.lane.b32.xlu0 %v955, 4
      %v1107 = vpop.permute.xlu0 %1106
      %1108 = vrot.lane.b32.xlu0 %v967, 4
      %v1109 = vpop.permute.xlu0 %1108
      %1110 = vrot.lane.b32.xlu0 %v979, 4
      %v1111 = vpop.permute.xlu0 %1110
      %1112 = vrot.lane.b32.xlu0 %v991, 4
      %v1113 = vpop.permute.xlu0 %1112
      %1114 = vrot.lane.b32.xlu0 %v1003, 4
      %v1115 = vpop.permute.xlu0 %1114
      %1116 = vrot.lane.b32.xlu0 %v1015, 4
      %v1117 = vpop.permute.xlu0 %1116
      %1118 = vrot.lane.b32.xlu0 %v1027, 4
      %v1119 = vpop.permute.xlu0 %1118
      %1120 = vrot.lane.b32.xlu0 %v1039, 4
      %v1121 = vpop.permute.xlu0 %1120
      %1122 = vrot.lane.b32.xlu0 %v1051, 4
      %v1123 = vpop.permute.xlu0 %1122
      %1124 = vrot.lane.b32.xlu0 %v1063, 4
      %v1125 = vpop.permute.xlu0 %1124
      %1126 = vrot.lane.b32.xlu0 %v1075, 4
      %v1127 = vpop.permute.xlu0 %1126
      %1128 = vrot.lane.b32.xlu0 %v1087, 4
      %v1129 = vpop.permute.xlu0 %1128
      %1130 = vrot.lane.b32.xlu0 %v1099, 4
      %v1131 = vpop.permute.xlu0 %1130
      %vm1132 = vcmask 1046528
      %v1133 = vrot.slane %v843, 1
      %v1134 = vrot.slane %v891, 1
      %v1135 = vsel %vm1132, %v1133, %v1134
      %v1136 = vrot.slane %v844, 1
      %v1137 = vrot.slane %v892, 1
      %v1138 = vsel %vm1132, %v1136, %v1137
      %v1139 = vrot.slane %v845, 1
      %v1140 = vrot.slane %v893, 1
      %v1141 = vsel %vm1132, %v1139, %v1140
      %v1142 = vrot.slane %v846, 1
      %v1143 = vrot.slane %v894, 1
      %v1144 = vsel %vm1132, %v1142, %v1143
      %v1145 = vrot.slane %v847, 1
      %v1146 = vrot.slane %v895, 1
      %v1147 = vsel %vm1132, %v1145, %v1146
      %v1148 = vrot.slane %v848, 1
      %v1149 = vrot.slane %v896, 1
      %v1150 = vsel %vm1132, %v1148, %v1149
      %v1151 = vrot.slane %v849, 1
      %v1152 = vrot.slane %v897, 1
      %v1153 = vsel %vm1132, %v1151, %v1152
      %v1154 = vrot.slane %v850, 1
      %v1155 = vrot.slane %v898, 1
      %v1156 = vsel %vm1132, %v1154, %v1155
      %v1157 = vrot.slane %v851, 1
      %v1158 = vrot.slane %v899, 1
      %v1159 = vsel %vm1132, %v1157, %v1158
      %v1160 = vrot.slane %v852, 1
      %v1161 = vrot.slane %v900, 1
      %v1162 = vsel %vm1132, %v1160, %v1161
      %v1163 = vrot.slane %v853, 1
      %v1164 = vrot.slane %v901, 1
      %v1165 = vsel %vm1132, %v1163, %v1164
      %v1166 = vrot.slane %v854, 1
      %v1167 = vrot.slane %v902, 1
      %v1168 = vsel %vm1132, %v1166, %v1167
      %v1169 = vrot.slane %v855, 1
      %v1170 = vrot.slane %v903, 1
      %v1171 = vsel %vm1132, %v1169, %v1170
      %v1172 = vrot.slane %v856, 1
      %v1173 = vrot.slane %v904, 1
      %v1174 = vsel %vm1132, %v1172, %v1173
      %v1175 = vrot.slane %v857, 1
      %v1176 = vrot.slane %v905, 1
      %v1177 = vsel %vm1132, %v1175, %v1176
      %v1178 = vrot.slane %v858, 1
      %v1179 = vrot.slane %v906, 1
      %v1180 = vsel %vm1132, %v1178, %v1179
      %1181 = vrot.lane.b32.xlu0 %v1135, 8
      %v1182 = vpop.permute.xlu0 %1181
      %1183 = vrot.lane.b32.xlu0 %v1138, 8
      %v1184 = vpop.permute.xlu0 %1183
      %1185 = vrot.lane.b32.xlu0 %v1141, 8
      %v1186 = vpop.permute.xlu0 %1185
      %1187 = vrot.lane.b32.xlu0 %v1144, 8
      %v1188 = vpop.permute.xlu0 %1187
      %1189 = vrot.lane.b32.xlu0 %v1147, 8
      %v1190 = vpop.permute.xlu0 %1189
      %1191 = vrot.lane.b32.xlu0 %v1150, 8
      %v1192 = vpop.permute.xlu0 %1191
      %1193 = vrot.lane.b32.xlu0 %v1153, 8
      %v1194 = vpop.permute.xlu0 %1193
      %1195 = vrot.lane.b32.xlu0 %v1156, 8
      %v1196 = vpop.permute.xlu0 %1195
      %1197 = vrot.lane.b32.xlu0 %v1159, 8
      %v1198 = vpop.permute.xlu0 %1197
      %1199 = vrot.lane.b32.xlu0 %v1162, 8
      %v1200 = vpop.permute.xlu0 %1199
      %1201 = vrot.lane.b32.xlu0 %v1165, 8
      %v1202 = vpop.permute.xlu0 %1201
      %1203 = vrot.lane.b32.xlu0 %v1168, 8
      %v1204 = vpop.permute.xlu0 %1203
      %1205 = vrot.lane.b32.xlu0 %v1171, 8
      %v1206 = vpop.permute.xlu0 %1205
      %1207 = vrot.lane.b32.xlu0 %v1174, 8
      %v1208 = vpop.permute.xlu0 %1207
      %1209 = vrot.lane.b32.xlu0 %v1177, 8
      %v1210 = vpop.permute.xlu0 %1209
      %1211 = vrot.lane.b32.xlu0 %v1180, 8
      %v1212 = vpop.permute.xlu0 %1211
      %vm1213 = vcmask 31744
      %v1215 = vsel %vm1213, %v843, %v1101
      %v1217 = vsel %vm1213, %v844, %v1103
      %v1219 = vsel %vm1213, %v845, %v1105
      %v1221 = vsel %vm1213, %v846, %v1107
      %v1223 = vsel %vm1213, %v847, %v1109
      %v1225 = vsel %vm1213, %v848, %v1111
      %v1227 = vsel %vm1213, %v849, %v1113
      %v1229 = vsel %vm1213, %v850, %v1115
      %v1231 = vsel %vm1213, %v851, %v1117
      %v1233 = vsel %vm1213, %v852, %v1119
      %v1235 = vsel %vm1213, %v853, %v1121
      %v1237 = vsel %vm1213, %v854, %v1123
      %v1239 = vsel %vm1213, %v855, %v1125
      %v1241 = vsel %vm1213, %v856, %v1127
      %v1243 = vsel %vm1213, %v857, %v1129
      %v1245 = vsel %vm1213, %v858, %v1131
      %vm1246 = vcmask 64512
      %v1248 = vsel %vm1246, %v1215, %v1182
      %v1250 = vsel %vm1246, %v1217, %v1184
      %v1252 = vsel %vm1246, %v1219, %v1186
      %v1254 = vsel %vm1246, %v1221, %v1188
      %v1256 = vsel %vm1246, %v1223, %v1190
      %v1258 = vsel %vm1246, %v1225, %v1192
      %v1260 = vsel %vm1246, %v1227, %v1194
      %v1262 = vsel %vm1246, %v1229, %v1196
      %v1264 = vsel %vm1246, %v1231, %v1198
      %v1266 = vsel %vm1246, %v1233, %v1200
      %v1268 = vsel %vm1246, %v1235, %v1202
      %v1270 = vsel %vm1246, %v1237, %v1204
      %v1272 = vsel %vm1246, %v1239, %v1206
      %v1274 = vsel %vm1246, %v1241, %v1208
      %v1276 = vsel %vm1246, %v1243, %v1210
      %v1278 = vsel %vm1246, %v1245, %v1212
      %vm1279 = vcmask 97280
      %v1281 = vsel %vm1279, %v1248, 0
      %v1282 = vsel %vm1279, %v1250, 0
      %v1283 = vsel %vm1279, %v1252, 0
      %v1284 = vsel %vm1279, %v1254, 0
      %v1285 = vsel %vm1279, %v1256, 0
      %v1286 = vsel %vm1279, %v1258, 0
      %v1287 = vsel %vm1279, %v1260, 0
      %v1288 = vsel %vm1279, %v1262, 0
      %v1289 = vsel %vm1279, %v1264, 0
      %v1290 = vsel %vm1279, %v1266, 0
      %v1291 = vsel %vm1279, %v1268, 0
      %v1292 = vsel %vm1279, %v1270, 0
      %v1293 = vsel %vm1279, %v1272, 0
      %v1294 = vsel %vm1279, %v1274, 0
      %v1295 = vsel %vm1279, %v1276, 0
      %v1296 = vsel %vm1279, %v1278, 0
      %v1297 = vld [vmem:[%s3] sm:$0xf]
      %v1298 = vld [vmem:[%s3 + $0x4] sm:$0xf]
      %v1301 = vunpack.c.l.b16 %v773
      %v1302 = vunpack.c.l.b16 %v774
      %v1303 = vpack.c.b16 %v1302, %v1301
      %v1305 = vunpack.c.l.b16 %v775
      %v1306 = vpack.c.b16 %v1305, %v1305
      %v1308 = vshrl.u32 %v1303, 16
      %v1310 = vshll.u32 %v1303, 16
      %v1312 = vrot.slane %v1310, 1
      %v1313 = vor.u32 %v1308, %v1312
      %v1315 = vshll.u32 %v1306, 16
      %v1317 = vrot.slane %v1315, 1
      %v1318 = vsel %vm907, %v1313, %v1317
      %1319 = vrot.lane.b32.xlu0 %v1318, 4
      %v1320 = vpop.permute.xlu0 %1319
      %v1321 = vrot.slane %v1303, 1
      %v1322 = vrot.slane %v1306, 1
      %v1323 = vsel %vm1132, %v1321, %v1322
      %1324 = vrot.lane.b32.xlu0 %v1323, 8
      %v1325 = vpop.permute.xlu0 %1324
      %v1327 = vsel %vm1213, %v1303, %v1320
      %v1329 = vsel %vm1246, %v1327, %v1325
      %v1330 = vsel %vm1279, %v1329, 0
      %v1331 = vld [vmem:[%s3 + $0x8] sm:$0xf]
      %v1332 = vld [vmem:[%s3 + $0xc] sm:$0xf]
      %v1335 = vunpack.c.l.b16 %v1331
      %v1336 = vunpack.c.l.b16 %v1332
      %v1337 = vpack.c.b16 %v1336, %v1335
      %vm1339 = vcmask 130048
      %v1340 = vsel %vm1339, %v1282, 0
      %v1342 = vsel %vm1339, %v1283, 0
      %v1344 = vsel %vm1339, %v1284, 0
      %v1346 = vsel %vm1339, %v1285, 0
      %v1348 = vsel %vm1339, %v1286, 0
      %v1350 = vsel %vm1339, %v1287, 0
      %v1352 = vsel %vm1339, %v1288, 0
      %v1354 = vsel %vm1339, %v1289, 0
      %v1356 = vsel %vm1339, %v1290, 0
      %v1358 = vsel %vm1339, %v1291, 0
      %v1360 = vsel %vm1339, %v1292, 0
      %v1362 = vsel %vm1339, %v1293, 0
      %v1364 = vsel %vm1339, %v1294, 0
      %v1366 = vsel %vm1339, %v1295, 0
      %v1368 = vsel %vm1339, %v1296, 0
      %v1370 = vsel %vm1339, %v1330, 0
      %1372 = vmatpush.bf16.msra.mxu0 0
      %1373 = vmatpush.bf16.msra.mxu0 0
      %1374 = vmatpush.bf16.msra.mxu0 0
      %1375 = vmatpush.bf16.msra.mxu0 0
      %1376 = vmatpush.bf16.msra.mxu0 0
      %1377 = vmatpush.bf16.msra.mxu0 0
      %1378 = vmatpush.bf16.msra.mxu0 0
      %1379 = vmatpush.bf16.msra.mxu0 %v1337
      %1380 = vmatmul.bf16.gmra.mxu0 %v1340
      %v1381 = vpop.f32.mrf.mxu0
      %v1382 = vadd.f32 0.0, %v1381
      %v1383 = vpop.f32.mrf.mxu0
      %v1384 = vadd.f32 0.0, %v1383
      %1385 = vmatmul.bf16.gmra.mxu0 %v1342
      %v1386 = vpop.f32.mrf.mxu0
      %v1387 = vadd.f32 0.0, %v1386
      %v1388 = vpop.f32.mrf.mxu0
      %v1389 = vadd.f32 0.0, %v1388
      %1390 = vmatmul.bf16.gmra.mxu0 %v1344
      %v1391 = vpop.f32.mrf.mxu0
      %v1392 = vadd.f32 0.0, %v1391
      %v1393 = vpop.f32.mrf.mxu0
      %v1394 = vadd.f32 0.0, %v1393
      %1395 = vmatmul.bf16.gmra.mxu0 %v1346
      %v1396 = vpop.f32.mrf.mxu0
      %v1397 = vadd.f32 0.0, %v1396
      %v1398 = vpop.f32.mrf.mxu0
      %v1399 = vadd.f32 0.0, %v1398
      %1400 = vmatmul.bf16.gmra.mxu0 %v1348
      %v1401 = vpop.f32.mrf.mxu0
      %v1402 = vadd.f32 0.0, %v1401
      %v1403 = vpop.f32.mrf.mxu0
      %v1404 = vadd.f32 0.0, %v1403
      %1405 = vmatmul.bf16.gmra.mxu0 %v1350
      %v1406 = vpop.f32.mrf.mxu0
      %v1407 = vadd.f32 0.0, %v1406
      %v1408 = vpop.f32.mrf.mxu0
      %v1409 = vadd.f32 0.0, %v1408
      %1410 = vmatmul.bf16.gmra.mxu0 %v1352
      %v1411 = vpop.f32.mrf.mxu0
      %v1412 = vadd.f32 0.0, %v1411
      %v1413 = vpop.f32.mrf.mxu0
      %v1414 = vadd.f32 0.0, %v1413
      %1415 = vmatmul.bf16.gmra.mxu0 %v1354
      %v1416 = vpop.f32.mrf.mxu0
      %v1417 = vadd.f32 0.0, %v1416
      %v1418 = vpop.f32.mrf.mxu0
      %v1419 = vadd.f32 0.0, %v1418
      %1420 = vmatmul.bf16.gmra.mxu0 %v1356
      %v1421 = vpop.f32.mrf.mxu0
      %v1422 = vadd.f32 0.0, %v1421
      %v1423 = vpop.f32.mrf.mxu0
      %v1424 = vadd.f32 0.0, %v1423
      %1425 = vmatmul.bf16.gmra.mxu0 %v1358
      %v1426 = vpop.f32.mrf.mxu0
      %v1427 = vadd.f32 0.0, %v1426
      %v1428 = vpop.f32.mrf.mxu0
      %v1429 = vadd.f32 0.0, %v1428
      %1430 = vmatmul.bf16.gmra.mxu0 %v1360
      %v1431 = vpop.f32.mrf.mxu0
      %v1432 = vadd.f32 0.0, %v1431
      %v1433 = vpop.f32.mrf.mxu0
      %v1434 = vadd.f32 0.0, %v1433
      %1435 = vmatmul.bf16.gmra.mxu0 %v1362
      %v1436 = vpop.f32.mrf.mxu0
      %v1437 = vadd.f32 0.0, %v1436
      %v1438 = vpop.f32.mrf.mxu0
      %v1439 = vadd.f32 0.0, %v1438
      %1440 = vmatmul.bf16.gmra.mxu0 %v1364
      %v1441 = vpop.f32.mrf.mxu0
      %v1442 = vadd.f32 0.0, %v1441
      %v1443 = vpop.f32.mrf.mxu0
      %v1444 = vadd.f32 0.0, %v1443
      %1445 = vmatmul.bf16.gmra.mxu0 %v1366
      %v1446 = vpop.f32.mrf.mxu0
      %v1447 = vadd.f32 0.0, %v1446
      %v1448 = vpop.f32.mrf.mxu0
      %v1449 = vadd.f32 0.0, %v1448
      %1450 = vmatmul.bf16.gmra.mxu0 %v1368
      %v1451 = vpop.f32.mrf.mxu0
      %v1452 = vadd.f32 0.0, %v1451
      %v1453 = vpop.f32.mrf.mxu0
      %v1454 = vadd.f32 0.0, %v1453
      %1455 = vmatmul.bf16.gmra.mxu0 %v1370
      %v1456 = vpop.f32.mrf.mxu0
      %v1457 = vadd.f32 0.0, %v1456
      %v1458 = vpop.f32.mrf.mxu0
      %v1459 = vadd.f32 0.0, %v1458
      %1460 = vdwg.mxu0
      %v1463 = vunpack.c.l.b16 %v1297
      %v1464 = vunpack.c.l.b16 %v1298
      %v1465 = vpack.c.b16 %v1464, %v1463
      %v1467 = vsel %vm1339, %v1281, 0
      %1469 = vmatpush.bf16.msra.mxu0 0
      %1470 = vmatpush.bf16.msra.mxu0 0
      %1471 = vmatpush.bf16.msra.mxu0 0
      %1472 = vmatpush.bf16.msra.mxu0 0
      %1473 = vmatpush.bf16.msra.mxu0 0
      %1474 = vmatpush.bf16.msra.mxu0 0
      %1475 = vmatpush.bf16.msra.mxu0 0
      %1476 = vmatpush.bf16.msra.mxu0 %v1465
      %1477 = vmatmul.bf16.gmra.mxu0 %v1467
      %v1478 = vpop.f32.mrf.mxu0
      %v1479 = vadd.f32 %v1382, %v1478
      %v1480 = vpop.f32.mrf.mxu0
      %v1481 = vadd.f32 %v1384, %v1480
      %1482 = vmatmul.bf16.gmra.mxu0 %v1340
      %v1483 = vpop.f32.mrf.mxu0
      %v1484 = vadd.f32 %v1387, %v1483
      %v1485 = vpop.f32.mrf.mxu0
      %v1486 = vadd.f32 %v1389, %v1485
      %1487 = vmatmul.bf16.gmra.mxu0 %v1342
      %v1488 = vpop.f32.mrf.mxu0
      %v1489 = vadd.f32 %v1392, %v1488
      %v1490 = vpop.f32.mrf.mxu0
      %v1491 = vadd.f32 %v1394, %v1490
      %1492 = vmatmul.bf16.gmra.mxu0 %v1344
      %v1493 = vpop.f32.mrf.mxu0
      %v1494 = vadd.f32 %v1397, %v1493
      %v1495 = vpop.f32.mrf.mxu0
      %v1496 = vadd.f32 %v1399, %v1495
      %1497 = vmatmul.bf16.gmra.mxu0 %v1346
      %v1498 = vpop.f32.mrf.mxu0
      %v1499 = vadd.f32 %v1402, %v1498
      %v1500 = vpop.f32.mrf.mxu0
      %v1501 = vadd.f32 %v1404, %v1500
      %1502 = vmatmul.bf16.gmra.mxu0 %v1348
      %v1503 = vpop.f32.mrf.mxu0
      %v1504 = vadd.f32 %v1407, %v1503
      %v1505 = vpop.f32.mrf.mxu0
      %v1506 = vadd.f32 %v1409, %v1505
      %1507 = vmatmul.bf16.gmra.mxu0 %v1350
      %v1508 = vpop.f32.mrf.mxu0
      %v1509 = vadd.f32 %v1412, %v1508
      %v1510 = vpop.f32.mrf.mxu0
      %v1511 = vadd.f32 %v1414, %v1510
      %1512 = vmatmul.bf16.gmra.mxu0 %v1352
      %v1513 = vpop.f32.mrf.mxu0
      %v1514 = vadd.f32 %v1417, %v1513
      %v1515 = vpop.f32.mrf.mxu0
      %v1516 = vadd.f32 %v1419, %v1515
      %1517 = vmatmul.bf16.gmra.mxu0 %v1354
      %v1518 = vpop.f32.mrf.mxu0
      %v1519 = vadd.f32 %v1422, %v1518
      %v1520 = vpop.f32.mrf.mxu0
      %v1521 = vadd.f32 %v1424, %v1520
      %1522 = vmatmul.bf16.gmra.mxu0 %v1356
      %v1523 = vpop.f32.mrf.mxu0
      %v1524 = vadd.f32 %v1427, %v1523
      %v1525 = vpop.f32.mrf.mxu0
      %v1526 = vadd.f32 %v1429, %v1525
      %1527 = vmatmul.bf16.gmra.mxu0 %v1358
      %v1528 = vpop.f32.mrf.mxu0
      %v1529 = vadd.f32 %v1432, %v1528
      %v1530 = vpop.f32.mrf.mxu0
      %v1531 = vadd.f32 %v1434, %v1530
      %1532 = vmatmul.bf16.gmra.mxu0 %v1360
      %v1533 = vpop.f32.mrf.mxu0
      %v1534 = vadd.f32 %v1437, %v1533
      %v1535 = vpop.f32.mrf.mxu0
      %v1536 = vadd.f32 %v1439, %v1535
      %1537 = vmatmul.bf16.gmra.mxu0 %v1362
      %v1538 = vpop.f32.mrf.mxu0
      %v1539 = vadd.f32 %v1442, %v1538
      %v1540 = vpop.f32.mrf.mxu0
      %v1541 = vadd.f32 %v1444, %v1540
      %1542 = vmatmul.bf16.gmra.mxu0 %v1364
      %v1543 = vpop.f32.mrf.mxu0
      %v1544 = vadd.f32 %v1447, %v1543
      %v1545 = vpop.f32.mrf.mxu0
      %v1546 = vadd.f32 %v1449, %v1545
      %1547 = vmatmul.bf16.gmra.mxu0 %v1366
      %v1548 = vpop.f32.mrf.mxu0
      %v1549 = vadd.f32 %v1452, %v1548
      %v1550 = vpop.f32.mrf.mxu0
      %v1551 = vadd.f32 %v1454, %v1550
      %1552 = vmatmul.bf16.gmra.mxu0 %v1368
      %v1553 = vpop.f32.mrf.mxu0
      %v1554 = vadd.f32 %v1457, %v1553
      %v1555 = vpop.f32.mrf.mxu0
      %v1556 = vadd.f32 %v1459, %v1555
      %1557 = vdwg.mxu0
      %v1560 = vunpack.c.l.b16 %v776
      %v1561 = vunpack.c.l.b16 %v777
      %v1562 = vpack.c.b16 %v1561, %v1560
      %v1564 = vunpack.c.l.b16 %v778
      %v1565 = vpack.c.b16 %v1564, %v1564
      %v1567 = vshrl.u32 %v1562, 16
      %v1569 = vshll.u32 %v1562, 16
      %v1571 = vrot.slane %v1569, 1
      %v1572 = vor.u32 %v1567, %v1571
      %v1574 = vshll.u32 %v1565, 16
      %v1576 = vrot.slane %v1574, 1
      %v1577 = vsel %vm907, %v1572, %v1576
      %1578 = vrot.lane.b32.xlu0 %v1577, 4
      %v1579 = vpop.permute.xlu0 %1578
      %v1580 = vrot.slane %v1562, 1
      %v1581 = vrot.slane %v1565, 1
      %v1582 = vsel %vm1132, %v1580, %v1581
      %1583 = vrot.lane.b32.xlu0 %v1582, 8
      %v1584 = vpop.permute.xlu0 %1583
      %v1586 = vsel %vm1213, %v1562, %v1579
      %v1588 = vsel %vm1246, %v1586, %v1584
      %v1589 = vsel %vm1279, %v1588, 0
      %v1590 = vld [vmem:[%s3 + $0x10] sm:$0xf]
      %v1591 = vld [vmem:[%s3 + $0x14] sm:$0xf]
      %v1594 = vunpack.c.l.b16 %v1590
      %v1595 = vunpack.c.l.b16 %v1591
      %v1596 = vpack.c.b16 %v1595, %v1594
      %v1598 = vsel %vm1339, %v1589, 0
      %1600 = vmatpush.bf16.msra.mxu0 0
      %1601 = vmatpush.bf16.msra.mxu0 0
      %1602 = vmatpush.bf16.msra.mxu0 0
      %1603 = vmatpush.bf16.msra.mxu0 0
      %1604 = vmatpush.bf16.msra.mxu0 0
      %1605 = vmatpush.bf16.msra.mxu0 0
      %1606 = vmatpush.bf16.msra.mxu0 0
      %1607 = vmatpush.bf16.msra.mxu0 %v1596
      %1608 = vmatmul.bf16.gmra.mxu0 %v1342
      %v1609 = vpop.f32.mrf.mxu0
      %v1610 = vadd.f32 0.0, %v1609
      %v1611 = vpop.f32.mrf.mxu0
      %v1612 = vadd.f32 0.0, %v1611
      %1613 = vmatmul.bf16.gmra.mxu0 %v1344
      %v1614 = vpop.f32.mrf.mxu0
      %v1615 = vadd.f32 0.0, %v1614
      %v1616 = vpop.f32.mrf.mxu0
      %v1617 = vadd.f32 0.0, %v1616
      %1618 = vmatmul.bf16.gmra.mxu0 %v1346
      %v1619 = vpop.f32.mrf.mxu0
      %v1620 = vadd.f32 0.0, %v1619
      %v1621 = vpop.f32.mrf.mxu0
      %v1622 = vadd.f32 0.0, %v1621
      %1623 = vmatmul.bf16.gmra.mxu0 %v1348
      %v1624 = vpop.f32.mrf.mxu0
      %v1625 = vadd.f32 0.0, %v1624
      %v1626 = vpop.f32.mrf.mxu0
      %v1627 = vadd.f32 0.0, %v1626
      %1628 = vmatmul.bf16.gmra.mxu0 %v1350
      %v1629 = vpop.f32.mrf.mxu0
      %v1630 = vadd.f32 0.0, %v1629
      %v1631 = vpop.f32.mrf.mxu0
      %v1632 = vadd.f32 0.0, %v1631
      %1633 = vmatmul.bf16.gmra.mxu0 %v1352
      %v1634 = vpop.f32.mrf.mxu0
      %v1635 = vadd.f32 0.0, %v1634
      %v1636 = vpop.f32.mrf.mxu0
      %v1637 = vadd.f32 0.0, %v1636
      %1638 = vmatmul.bf16.gmra.mxu0 %v1354
      %v1639 = vpop.f32.mrf.mxu0
      %v1640 = vadd.f32 0.0, %v1639
      %v1641 = vpop.f32.mrf.mxu0
      %v1642 = vadd.f32 0.0, %v1641
      %1643 = vmatmul.bf16.gmra.mxu0 %v1356
      %v1644 = vpop.f32.mrf.mxu0
      %v1645 = vadd.f32 0.0, %v1644
      %v1646 = vpop.f32.mrf.mxu0
      %v1647 = vadd.f32 0.0, %v1646
      %1648 = vmatmul.bf16.gmra.mxu0 %v1358
      %v1649 = vpop.f32.mrf.mxu0
      %v1650 = vadd.f32 0.0, %v1649
      %v1651 = vpop.f32.mrf.mxu0
      %v1652 = vadd.f32 0.0, %v1651
      %1653 = vmatmul.bf16.gmra.mxu0 %v1360
      %v1654 = vpop.f32.mrf.mxu0
      %v1655 = vadd.f32 0.0, %v1654
      %v1656 = vpop.f32.mrf.mxu0
      %v1657 = vadd.f32 0.0, %v1656
      %1658 = vmatmul.bf16.gmra.mxu0 %v1362
      %v1659 = vpop.f32.mrf.mxu0
      %v1660 = vadd.f32 0.0, %v1659
      %v1661 = vpop.f32.mrf.mxu0
      %v1662 = vadd.f32 0.0, %v1661
      %1663 = vmatmul.bf16.gmra.mxu0 %v1364
      %v1664 = vpop.f32.mrf.mxu0
      %v1665 = vadd.f32 0.0, %v1664
      %v1666 = vpop.f32.mrf.mxu0
      %v1667 = vadd.f32 0.0, %v1666
      %1668 = vmatmul.bf16.gmra.mxu0 %v1366
      %v1669 = vpop.f32.mrf.mxu0
      %v1670 = vadd.f32 0.0, %v1669
      %v1671 = vpop.f32.mrf.mxu0
      %v1672 = vadd.f32 0.0, %v1671
      %1673 = vmatmul.bf16.gmra.mxu0 %v1368
      %v1674 = vpop.f32.mrf.mxu0
      %v1675 = vadd.f32 0.0, %v1674
      %v1676 = vpop.f32.mrf.mxu0
      %v1677 = vadd.f32 0.0, %v1676
      %1678 = vmatmul.bf16.gmra.mxu0 %v1370
      %v1679 = vpop.f32.mrf.mxu0
      %v1680 = vadd.f32 0.0, %v1679
      %v1681 = vpop.f32.mrf.mxu0
      %v1682 = vadd.f32 0.0, %v1681
      %1683 = vmatmul.bf16.gmra.mxu0 %v1598
      %v1684 = vpop.f32.mrf.mxu0
      %v1685 = vadd.f32 0.0, %v1684
      %v1686 = vpop.f32.mrf.mxu0
      %v1687 = vadd.f32 0.0, %v1686
      %1688 = vdwg.mxu0
      %v1689 = vadd.f32 %v1479, %v1610
      %v1690 = vadd.f32 %v1481, %v1612
      %v1691 = vadd.f32 %v1484, %v1615
      %v1692 = vadd.f32 %v1486, %v1617
      %v1693 = vadd.f32 %v1489, %v1620
      %v1694 = vadd.f32 %v1491, %v1622
      %v1695 = vadd.f32 %v1494, %v1625
      %v1696 = vadd.f32 %v1496, %v1627
      %v1697 = vadd.f32 %v1499, %v1630
      %v1698 = vadd.f32 %v1501, %v1632
      %v1699 = vadd.f32 %v1504, %v1635
      %v1700 = vadd.f32 %v1506, %v1637
      %v1701 = vadd.f32 %v1509, %v1640
      %v1702 = vadd.f32 %v1511, %v1642
      %v1703 = vadd.f32 %v1514, %v1645
      %v1704 = vadd.f32 %v1516, %v1647
      %v1705 = vadd.f32 %v1519, %v1650
      %v1706 = vadd.f32 %v1521, %v1652
      %v1707 = vadd.f32 %v1524, %v1655
      %v1708 = vadd.f32 %v1526, %v1657
      %v1709 = vadd.f32 %v1529, %v1660
      %v1710 = vadd.f32 %v1531, %v1662
      %v1711 = vadd.f32 %v1534, %v1665
      %v1712 = vadd.f32 %v1536, %v1667
      %v1713 = vadd.f32 %v1539, %v1670
      %v1714 = vadd.f32 %v1541, %v1672
      %v1715 = vadd.f32 %v1544, %v1675
      %v1716 = vadd.f32 %v1546, %v1677
      %v1717 = vadd.f32 %v1549, %v1680
      %v1718 = vadd.f32 %v1551, %v1682
      %v1719 = vadd.f32 %v1554, %v1685
      %v1720 = vadd.f32 %v1556, %v1687
      %v1721 = vld [vmem:[%s4] sm:$0x1]
      %v1723 = vperm.slane %v1721, 0
      %v1725 = vadd.f32 %v1689, %v1723
      %v1726 = vadd.f32 %v1690, %v1723
      %v1727 = vadd.f32 %v1691, %v1723
      %v1728 = vadd.f32 %v1692, %v1723
      %v1729 = vadd.f32 %v1693, %v1723
      %v1730 = vadd.f32 %v1694, %v1723
      %v1731 = vadd.f32 %v1695, %v1723
      %v1732 = vadd.f32 %v1696, %v1723
      %v1733 = vadd.f32 %v1697, %v1723
      %v1734 = vadd.f32 %v1698, %v1723
      %v1735 = vadd.f32 %v1699, %v1723
      %v1736 = vadd.f32 %v1700, %v1723
      %v1737 = vadd.f32 %v1701, %v1723
      %v1738 = vadd.f32 %v1702, %v1723
      %v1739 = vadd.f32 %v1703, %v1723
      %v1740 = vadd.f32 %v1704, %v1723
      %v1741 = vadd.f32 %v1705, %v1723
      %v1742 = vadd.f32 %v1706, %v1723
      %v1743 = vadd.f32 %v1707, %v1723
      %v1744 = vadd.f32 %v1708, %v1723
      %v1745 = vadd.f32 %v1709, %v1723
      %v1746 = vadd.f32 %v1710, %v1723
      %v1747 = vadd.f32 %v1711, %v1723
      %v1748 = vadd.f32 %v1712, %v1723
      %v1749 = vadd.f32 %v1713, %v1723
      %v1750 = vadd.f32 %v1714, %v1723
      %v1751 = vadd.f32 %v1715, %v1723
      %v1752 = vadd.f32 %v1716, %v1723
      %v1753 = vadd.f32 %v1717, %v1723
      %v1754 = vadd.f32 %v1718, %v1723
      %v1755 = vadd.f32 %v1719, %v1723
      %v1756 = vadd.f32 %v1720, %v1723
      %v1757 = vmax.f32 %v1725, 0.0
      %v1758 = vmax.f32 %v1726, 0.0
      %v1759 = vmax.f32 %v1727, 0.0
      %v1760 = vmax.f32 %v1728, 0.0
      %v1761 = vmax.f32 %v1729, 0.0
      %v1762 = vmax.f32 %v1730, 0.0
      %v1763 = vmax.f32 %v1731, 0.0
      %v1764 = vmax.f32 %v1732, 0.0
      %v1765 = vmax.f32 %v1733, 0.0
      %v1766 = vmax.f32 %v1734, 0.0
      %v1767 = vmax.f32 %v1735, 0.0
      %v1768 = vmax.f32 %v1736, 0.0
      %v1769 = vmax.f32 %v1737, 0.0
      %v1770 = vmax.f32 %v1738, 0.0
      %v1771 = vmax.f32 %v1739, 0.0
      %v1772 = vmax.f32 %v1740, 0.0
      %v1773 = vmax.f32 %v1741, 0.0
      %v1774 = vmax.f32 %v1742, 0.0
      %v1775 = vmax.f32 %v1743, 0.0
      %v1776 = vmax.f32 %v1744, 0.0
      %v1777 = vmax.f32 %v1745, 0.0
      %v1778 = vmax.f32 %v1746, 0.0
      %v1779 = vmax.f32 %v1747, 0.0
      %v1780 = vmax.f32 %v1748, 0.0
      %v1781 = vmax.f32 %v1749, 0.0
      %v1782 = vmax.f32 %v1750, 0.0
      %v1783 = vmax.f32 %v1751, 0.0
      %v1784 = vmax.f32 %v1752, 0.0
      %v1785 = vmax.f32 %v1753, 0.0
      %v1786 = vmax.f32 %v1754, 0.0
      %v1787 = vmax.f32 %v1755, 0.0
      %v1788 = vmax.f32 %v1756, 0.0
      %v1789 = vsel %vm1246, %v1757, 0.0
      %v1790 = vsel %vm1246, %v1758, 0.0
      %v1791 = vadd.f32 %v1789, %v1790
      %v1792 = vsel %vm1246, %v1759, 0.0
      %v1793 = vadd.f32 %v1791, %v1792
      %v1794 = vsel %vm1246, %v1760, 0.0
      %v1795 = vadd.f32 %v1793, %v1794
      %v1796 = vsel %vm1246, %v1761, 0.0
      %v1797 = vadd.f32 %v1795, %v1796
      %v1798 = vsel %vm1246, %v1762, 0.0
      %v1799 = vadd.f32 %v1797, %v1798
      %v1800 = vsel %vm1246, %v1763, 0.0
      %v1801 = vadd.f32 %v1799, %v1800
      %v1802 = vsel %vm1246, %v1764, 0.0
      %v1803 = vadd.f32 %v1801, %v1802
      %v1804 = vsel %vm1246, %v1765, 0.0
      %v1805 = vadd.f32 %v1803, %v1804
      %v1806 = vsel %vm1246, %v1766, 0.0
      %v1807 = vadd.f32 %v1805, %v1806
      %v1808 = vsel %vm1246, %v1767, 0.0
      %v1809 = vadd.f32 %v1807, %v1808
      %v1810 = vsel %vm1246, %v1768, 0.0
      %v1811 = vadd.f32 %v1809, %v1810
      %v1812 = vsel %vm1246, %v1769, 0.0
      %v1813 = vadd.f32 %v1811, %v1812
      %v1814 = vsel %vm1246, %v1770, 0.0
      %v1815 = vadd.f32 %v1813, %v1814
      %v1816 = vsel %vm1246, %v1771, 0.0
      %v1817 = vadd.f32 %v1815, %v1816
      %v1818 = vsel %vm1246, %v1772, 0.0
      %v1819 = vadd.f32 %v1817, %v1818
      %v1820 = vsel %vm1246, %v1773, 0.0
      %v1821 = vadd.f32 %v1819, %v1820
      %v1822 = vsel %vm1246, %v1774, 0.0
      %v1823 = vadd.f32 %v1821, %v1822
      %v1824 = vsel %vm1246, %v1775, 0.0
      %v1825 = vadd.f32 %v1823, %v1824
      %v1826 = vsel %vm1246, %v1776, 0.0
      %v1827 = vadd.f32 %v1825, %v1826
      %v1828 = vsel %vm1246, %v1777, 0.0
      %v1829 = vadd.f32 %v1827, %v1828
      %v1830 = vsel %vm1246, %v1778, 0.0
      %v1831 = vadd.f32 %v1829, %v1830
      %v1832 = vsel %vm1246, %v1779, 0.0
      %v1833 = vadd.f32 %v1831, %v1832
      %v1834 = vsel %vm1246, %v1780, 0.0
      %v1835 = vadd.f32 %v1833, %v1834
      %v1836 = vsel %vm1246, %v1781, 0.0
      %v1837 = vadd.f32 %v1835, %v1836
      %v1838 = vsel %vm1246, %v1782, 0.0
      %v1839 = vadd.f32 %v1837, %v1838
      %v1840 = vsel %vm1246, %v1783, 0.0
      %v1841 = vadd.f32 %v1839, %v1840
      %v1842 = vsel %vm1246, %v1784, 0.0
      %v1843 = vadd.f32 %v1841, %v1842
      %v1844 = vsel %vm1246, %v1785, 0.0
      %v1845 = vadd.f32 %v1843, %v1844
      %v1846 = vsel %vm1246, %v1786, 0.0
      %v1847 = vadd.f32 %v1845, %v1846
      %v1848 = vsel %vm1246, %v1787, 0.0
      %v1849 = vadd.f32 %v1847, %v1848
      %v1850 = vsel %vm1246, %v1788, 0.0
      %v1851 = vadd.f32 %v1849, %v1850
      %v1852 = vrot.slane %v1851, 4
      %v1853 = vadd.f32 %v1851, %v1852
      %v1854 = vrot.slane %v1853, 2
      %v1855 = vadd.f32 %v1853, %v1854
      %v1856 = vrot.slane %v1855, 1
      %v1857 = vadd.f32 %v1855, %v1856
      %v1858 = vmul.f32 %v1857, 0.00390625
      %v1859 = vsub.f32 %v1757, %v1858
      %v1860 = vsub.f32 %v1758, %v1858
      %v1861 = vsub.f32 %v1759, %v1858
      %v1862 = vsub.f32 %v1760, %v1858
      %v1863 = vsub.f32 %v1761, %v1858
      %v1864 = vsub.f32 %v1762, %v1858
      %v1865 = vsub.f32 %v1763, %v1858
      %v1866 = vsub.f32 %v1764, %v1858
      %v1867 = vsub.f32 %v1765, %v1858
      %v1868 = vsub.f32 %v1766, %v1858
      %v1869 = vsub.f32 %v1767, %v1858
      %v1870 = vsub.f32 %v1768, %v1858
      %v1871 = vsub.f32 %v1769, %v1858
      %v1872 = vsub.f32 %v1770, %v1858
      %v1873 = vsub.f32 %v1771, %v1858
      %v1874 = vsub.f32 %v1772, %v1858
      %v1875 = vsub.f32 %v1773, %v1858
      %v1876 = vsub.f32 %v1774, %v1858
      %v1877 = vsub.f32 %v1775, %v1858
      %v1878 = vsub.f32 %v1776, %v1858
      %v1879 = vsub.f32 %v1777, %v1858
      %v1880 = vsub.f32 %v1778, %v1858
      %v1881 = vsub.f32 %v1779, %v1858
      %v1882 = vsub.f32 %v1780, %v1858
      %v1883 = vsub.f32 %v1781, %v1858
      %v1884 = vsub.f32 %v1782, %v1858
      %v1885 = vsub.f32 %v1783, %v1858
      %v1886 = vsub.f32 %v1784, %v1858
      %v1887 = vsub.f32 %v1785, %v1858
      %v1888 = vsub.f32 %v1786, %v1858
      %v1889 = vsub.f32 %v1787, %v1858
      %v1890 = vsub.f32 %v1788, %v1858
      %v1891 = vmul.f32 %v1859, %v1859
      %v1892 = vmul.f32 %v1860, %v1860
      %v1893 = vmul.f32 %v1861, %v1861
      %v1894 = vmul.f32 %v1862, %v1862
      %v1895 = vmul.f32 %v1863, %v1863
      %v1896 = vmul.f32 %v1864, %v1864
      %v1897 = vmul.f32 %v1865, %v1865
      %v1898 = vmul.f32 %v1866, %v1866
      %v1899 = vmul.f32 %v1867, %v1867
      %v1900 = vmul.f32 %v1868, %v1868
      %v1901 = vmul.f32 %v1869, %v1869
      %v1902 = vmul.f32 %v1870, %v1870
      %v1903 = vmul.f32 %v1871, %v1871
      %v1904 = vmul.f32 %v1872, %v1872
      %v1905 = vmul.f32 %v1873, %v1873
      %v1906 = vmul.f32 %v1874, %v1874
      %v1907 = vmul.f32 %v1875, %v1875
      %v1908 = vmul.f32 %v1876, %v1876
      %v1909 = vmul.f32 %v1877, %v1877
      %v1910 = vmul.f32 %v1878, %v1878
      %v1911 = vmul.f32 %v1879, %v1879
      %v1912 = vmul.f32 %v1880, %v1880
      %v1913 = vmul.f32 %v1881, %v1881
      %v1914 = vmul.f32 %v1882, %v1882
      %v1915 = vmul.f32 %v1883, %v1883
      %v1916 = vmul.f32 %v1884, %v1884
      %v1917 = vmul.f32 %v1885, %v1885
      %v1918 = vmul.f32 %v1886, %v1886
      %v1919 = vmul.f32 %v1887, %v1887
      %v1920 = vmul.f32 %v1888, %v1888
      %v1921 = vmul.f32 %v1889, %v1889
      %v1922 = vmul.f32 %v1890, %v1890
      %v1923 = vsel %vm1246, %v1891, 0.0
      %v1924 = vsel %vm1246, %v1892, 0.0
      %v1925 = vadd.f32 %v1923, %v1924
      %v1926 = vsel %vm1246, %v1893, 0.0
      %v1927 = vadd.f32 %v1925, %v1926
      %v1928 = vsel %vm1246, %v1894, 0.0
      %v1929 = vadd.f32 %v1927, %v1928
      %v1930 = vsel %vm1246, %v1895, 0.0
      %v1931 = vadd.f32 %v1929, %v1930
      %v1932 = vsel %vm1246, %v1896, 0.0
      %v1933 = vadd.f32 %v1931, %v1932
      %v1934 = vsel %vm1246, %v1897, 0.0
      %v1935 = vadd.f32 %v1933, %v1934
      %v1936 = vsel %vm1246, %v1898, 0.0
      %v1937 = vadd.f32 %v1935, %v1936
      %v1938 = vsel %vm1246, %v1899, 0.0
      %v1939 = vadd.f32 %v1937, %v1938
      %v1940 = vsel %vm1246, %v1900, 0.0
      %v1941 = vadd.f32 %v1939, %v1940
      %v1942 = vsel %vm1246, %v1901, 0.0
      %v1943 = vadd.f32 %v1941, %v1942
      %v1944 = vsel %vm1246, %v1902, 0.0
      %v1945 = vadd.f32 %v1943, %v1944
      %v1946 = vsel %vm1246, %v1903, 0.0
      %v1947 = vadd.f32 %v1945, %v1946
      %v1948 = vsel %vm1246, %v1904, 0.0
      %v1949 = vadd.f32 %v1947, %v1948
      %v1950 = vsel %vm1246, %v1905, 0.0
      %v1951 = vadd.f32 %v1949, %v1950
      %v1952 = vsel %vm1246, %v1906, 0.0
      %v1953 = vadd.f32 %v1951, %v1952
      %v1954 = vsel %vm1246, %v1907, 0.0
      %v1955 = vadd.f32 %v1953, %v1954
      %v1956 = vsel %vm1246, %v1908, 0.0
      %v1957 = vadd.f32 %v1955, %v1956
      %v1958 = vsel %vm1246, %v1909, 0.0
      %v1959 = vadd.f32 %v1957, %v1958
      %v1960 = vsel %vm1246, %v1910, 0.0
      %v1961 = vadd.f32 %v1959, %v1960
      %v1962 = vsel %vm1246, %v1911, 0.0
      %v1963 = vadd.f32 %v1961, %v1962
      %v1964 = vsel %vm1246, %v1912, 0.0
      %v1965 = vadd.f32 %v1963, %v1964
      %v1966 = vsel %vm1246, %v1913, 0.0
      %v1967 = vadd.f32 %v1965, %v1966
      %v1968 = vsel %vm1246, %v1914, 0.0
      %v1969 = vadd.f32 %v1967, %v1968
      %v1970 = vsel %vm1246, %v1915, 0.0
      %v1971 = vadd.f32 %v1969, %v1970
      %v1972 = vsel %vm1246, %v1916, 0.0
      %v1973 = vadd.f32 %v1971, %v1972
      %v1974 = vsel %vm1246, %v1917, 0.0
      %v1975 = vadd.f32 %v1973, %v1974
      %v1976 = vsel %vm1246, %v1918, 0.0
      %v1977 = vadd.f32 %v1975, %v1976
      %v1978 = vsel %vm1246, %v1919, 0.0
      %v1979 = vadd.f32 %v1977, %v1978
      %v1980 = vsel %vm1246, %v1920, 0.0
      %v1981 = vadd.f32 %v1979, %v1980
      %v1982 = vsel %vm1246, %v1921, 0.0
      %v1983 = vadd.f32 %v1981, %v1982
      %v1984 = vsel %vm1246, %v1922, 0.0
      %v1985 = vadd.f32 %v1983, %v1984
      %v1986 = vrot.slane %v1985, 4
      %v1987 = vadd.f32 %v1985, %v1986
      %v1988 = vrot.slane %v1987, 2
      %v1989 = vadd.f32 %v1987, %v1988
      %v1990 = vrot.slane %v1989, 1
      %v1991 = vadd.f32 %v1989, %v1990
      %v1992 = vadd.f32 %v1857, 0.0
      %1993 = vst.msk [vmem:[%s295] sm:$0xff] %vm1246, %v1992
      %v1994 = vadd.f32 %v1991, 0.0
      %1995 = vst.msk [vmem:[%s299] sm:$0xff] %vm1246, %v1994
      %vm1996 = vcmask 60416
      %1997 = vst.msk [vmem:[%s291] sm:$0xf] %vm1996, 0
      %1998 = vst.msk [vmem:[%s291 + $0x4] sm:$0xf] %vm1996, 0
      %vm1999 = vcmask 57344
      %2000 = vst.msk [vmem:[%s291 + $0x8] sm:$0x1] %vm1999, 0
      %2001 = vst.msk [vmem:[%s291 + $0xc] sm:$0xf] %vm1996, 0
      %2002 = vst.msk [vmem:[%s291 + $0x10] sm:$0xf] %vm1996, 0
      %2003 = vst.msk [vmem:[%s291 + $0x14] sm:$0x1] %vm1999, 0
      %2004 = vst.msk [vmem:[%s291 + $0x18] sm:$0xf] %vm1996, 0
      %2005 = vst.msk [vmem:[%s291 + $0x1c] sm:$0xf] %vm1996, 0
      %2006 = vst.msk [vmem:[%s291 + $0x20] sm:$0x1] %vm1999, 0
      %2007 = vst.msk [vmem:[%s291 + $0x24] sm:$0xf] %vm1996, 0
      %2008 = vst.msk [vmem:[%s291 + $0x28] sm:$0xf] %vm1996, 0
      %2009 = vst.msk [vmem:[%s291 + $0x2c] sm:$0x1] %vm1999, 0
      %2010 = vst.msk [vmem:[%s291 + $0x30] sm:$0xf] %vm1996, 0
      %2011 = vst.msk [vmem:[%s291 + $0x34] sm:$0xf] %vm1996, 0
      %2012 = vst.msk [vmem:[%s291 + $0x38] sm:$0x1] %vm1999, 0
      %2013 = vst.msk [vmem:[%s291 + $0x3c] sm:$0xf] %vm1996, 0
      %2014 = vst.msk [vmem:[%s291 + $0x40] sm:$0xf] %vm1996, 0
      %2015 = vst.msk [vmem:[%s291 + $0x44] sm:$0x1] %vm1999, 0
      %2016 = vst.msk [vmem:[%s291 + $0x48] sm:$0xf] %vm1996, 0
      %2017 = vst.msk [vmem:[%s291 + $0x4c] sm:$0xf] %vm1996, 0
      %2018 = vst.msk [vmem:[%s291 + $0x50] sm:$0x1] %vm1999, 0
      %2019 = vst.msk [vmem:[%s291 + $0x54] sm:$0xf] %vm1996, 0
      %2020 = vst.msk [vmem:[%s291 + $0x58] sm:$0xf] %vm1996, 0
      %2021 = vst.msk [vmem:[%s291 + $0x5c] sm:$0x1] %vm1999, 0
      %2022 = vst.msk [vmem:[%s291 + $0x60] sm:$0xf] %vm1996, 0
      %2023 = vst.msk [vmem:[%s291 + $0x64] sm:$0xf] %vm1996, 0
      %2024 = vst.msk [vmem:[%s291 + $0x68] sm:$0x1] %vm1999, 0
      %2025 = vst.msk [vmem:[%s291 + $0x6c] sm:$0xf] %vm1996, 0
      %2026 = vst.msk [vmem:[%s291 + $0x70] sm:$0xf] %vm1996, 0
      %2027 = vst.msk [vmem:[%s291 + $0x74] sm:$0x1] %vm1999, 0
      %2028 = vst.msk [vmem:[%s291 + $0x78] sm:$0xf] %vm1996, 0
      %2029 = vst.msk [vmem:[%s291 + $0x7c] sm:$0xf] %vm1996, 0
      %2030 = vst.msk [vmem:[%s291 + $0x80] sm:$0x1] %vm1999, 0
      %2031 = vst.msk [vmem:[%s291 + $0x84] sm:$0xf] %vm1996, 0
      %2032 = vst.msk [vmem:[%s291 + $0x88] sm:$0xf] %vm1996, 0
      %2033 = vst.msk [vmem:[%s291 + $0x8c] sm:$0x1] %vm1999, 0
      %2034 = vst.msk [vmem:[%s291 + $0x90] sm:$0xf] %vm1996, 0
      %2035 = vst.msk [vmem:[%s291 + $0x94] sm:$0xf] %vm1996, 0
      %2036 = vst.msk [vmem:[%s291 + $0x98] sm:$0x1] %vm1999, 0
      %2037 = vst.msk [vmem:[%s291 + $0x9c] sm:$0xf] %vm1996, 0
      %2038 = vst.msk [vmem:[%s291 + $0xa0] sm:$0xf] %vm1996, 0
      %2039 = vst.msk [vmem:[%s291 + $0xa4] sm:$0x1] %vm1999, 0
      %2040 = vst.msk [vmem:[%s291 + $0xa8] sm:$0xf] %vm1996, 0
      %2041 = vst.msk [vmem:[%s291 + $0xac] sm:$0xf] %vm1996, 0
      %2042 = vst.msk [vmem:[%s291 + $0xb0] sm:$0x1] %vm1999, 0
      %2043 = vst.msk [vmem:[%s291 + $0xb4] sm:$0xf] %vm1996, 0
      %2044 = vst.msk [vmem:[%s291 + $0xb8] sm:$0xf] %vm1996, 0
      %2045 = vst.msk [vmem:[%s291 + $0xbc] sm:$0x1] %vm1999, 0
      %2046 = vst.msk [vmem:[%s291 + $0xc0] sm:$0xf] %vm1996, 0
      %2047 = vst.msk [vmem:[%s291 + $0xc4] sm:$0xf] %vm1996, 0
      %2048 = vst.msk [vmem:[%s291 + $0xc8] sm:$0x1] %vm1999, 0
      %2049 = vst.msk [vmem:[%s291 + $0xcc] sm:$0xf] %vm1996, 0
      %2050 = vst.msk [vmem:[%s291 + $0xd0] sm:$0xf] %vm1996, 0
      %2051 = vst.msk [vmem:[%s291 + $0xd4] sm:$0x1] %vm1999, 0
      %v2052 = vpack.c.bf16 %v1757, %v1757
      %v2053 = vpack.c.bf16 %v1758, %v1758
      %v2054 = vpack.c.bf16 %v1759, %v1759
      %v2055 = vpack.c.bf16 %v1760, %v1760
      %v2056 = vpack.c.bf16 %v1761, %v1761
      %v2057 = vpack.c.bf16 %v1762, %v1762
      %v2058 = vpack.c.bf16 %v1763, %v1763
      %v2059 = vpack.c.bf16 %v1764, %v1764
      %v2060 = vpack.c.bf16 %v1765, %v1765
      %v2061 = vpack.c.bf16 %v1766, %v1766
      %v2062 = vpack.c.bf16 %v1767, %v1767
      %v2063 = vpack.c.bf16 %v1768, %v1768
      %v2064 = vpack.c.bf16 %v1769, %v1769
      %v2065 = vpack.c.bf16 %v1770, %v1770
      %v2066 = vpack.c.bf16 %v1771, %v1771
      %v2067 = vpack.c.bf16 %v1772, %v1772
      %v2068 = vpack.c.bf16 %v1773, %v1773
      %v2069 = vpack.c.bf16 %v1774, %v1774
      %v2070 = vpack.c.bf16 %v1775, %v1775
      %v2071 = vpack.c.bf16 %v1776, %v1776
      %v2072 = vpack.c.bf16 %v1777, %v1777
      %v2073 = vpack.c.bf16 %v1778, %v1778
      %v2074 = vpack.c.bf16 %v1779, %v1779
      %v2075 = vpack.c.bf16 %v1780, %v1780
      %v2076 = vpack.c.bf16 %v1781, %v1781
      %v2077 = vpack.c.bf16 %v1782, %v1782
      %v2078 = vpack.c.bf16 %v1783, %v1783
      %v2079 = vpack.c.bf16 %v1784, %v1784
      %v2080 = vpack.c.bf16 %v1785, %v1785
      %v2081 = vpack.c.bf16 %v1786, %v1786
      %v2082 = vpack.c.bf16 %v1787, %v1787
      %v2083 = vpack.c.bf16 %v1788, %v1788
      %vm2084 = vsmask.f32 4368
      %vm2085 = vmor %vm615, %vm2084
      %v2087 = vshrl.u32 %v2052, 16
      %v2089 = vrot.slane %v2087, 7
      %v2090 = vshll.u32 %v2052, 16
      %v2092 = vor.u32 %v2089, %v2090
      %v2093 = vrot.slane %v2089, 4
      %v2095 = vshrl.u32 %v2053, 16
      %v2097 = vrot.slane %v2095, 7
      %v2098 = vshll.u32 %v2053, 16
      %v2100 = vor.u32 %v2097, %v2098
      %v2101 = vsel %vm2085, %v2093, %v2100
      %v2102 = vrot.slane %v2097, 4
      %v2104 = vshrl.u32 %v2054, 16
      %v2106 = vrot.slane %v2104, 7
      %v2107 = vshll.u32 %v2054, 16
      %v2109 = vor.u32 %v2106, %v2107
      %v2110 = vrot.slane %v2106, 4
      %v2112 = vshrl.u32 %v2055, 16
      %v2114 = vrot.slane %v2112, 7
      %v2115 = vshll.u32 %v2055, 16
      %v2117 = vor.u32 %v2114, %v2115
      %v2118 = vsel %vm2085, %v2110, %v2117
      %v2119 = vrot.slane %v2114, 4
      %v2121 = vshrl.u32 %v2056, 16
      %v2123 = vrot.slane %v2121, 7
      %v2124 = vshll.u32 %v2056, 16
      %v2126 = vor.u32 %v2123, %v2124
      %v2127 = vrot.slane %v2123, 4
      %v2129 = vshrl.u32 %v2057, 16
      %v2131 = vrot.slane %v2129, 7
      %v2132 = vshll.u32 %v2057, 16
      %v2134 = vor.u32 %v2131, %v2132
      %v2135 = vsel %vm2085, %v2127, %v2134
      %v2136 = vrot.slane %v2131, 4
      %v2138 = vshrl.u32 %v2058, 16
      %v2140 = vrot.slane %v2138, 7
      %v2141 = vshll.u32 %v2058, 16
      %v2143 = vor.u32 %v2140, %v2141
      %v2144 = vrot.slane %v2140, 4
      %v2146 = vshrl.u32 %v2059, 16
      %v2148 = vrot.slane %v2146, 7
      %v2149 = vshll.u32 %v2059, 16
      %v2151 = vor.u32 %v2148, %v2149
      %v2152 = vsel %vm2085, %v2144, %v2151
      %v2153 = vrot.slane %v2148, 4
      %v2155 = vshrl.u32 %v2060, 16
      %v2157 = vrot.slane %v2155, 7
      %v2158 = vshll.u32 %v2060, 16
      %v2160 = vor.u32 %v2157, %v2158
      %v2161 = vrot.slane %v2157, 4
      %v2163 = vshrl.u32 %v2061, 16
      %v2165 = vrot.slane %v2163, 7
      %v2166 = vshll.u32 %v2061, 16
      %v2168 = vor.u32 %v2165, %v2166
      %v2169 = vsel %vm2085, %v2161, %v2168
      %v2170 = vrot.slane %v2165, 4
      %v2172 = vshrl.u32 %v2062, 16
      %v2174 = vrot.slane %v2172, 7
      %v2175 = vshll.u32 %v2062, 16
      %v2177 = vor.u32 %v2174, %v2175
      %v2178 = vrot.slane %v2174, 4
      %v2180 = vshrl.u32 %v2063, 16
      %v2182 = vrot.slane %v2180, 7
      %v2183 = vshll.u32 %v2063, 16
      %v2185 = vor.u32 %v2182, %v2183
      %v2186 = vsel %vm2085, %v2178, %v2185
      %v2187 = vrot.slane %v2182, 4
      %v2189 = vshrl.u32 %v2064, 16
      %v2191 = vrot.slane %v2189, 7
      %v2192 = vshll.u32 %v2064, 16
      %v2194 = vor.u32 %v2191, %v2192
      %v2195 = vrot.slane %v2191, 4
      %v2197 = vshrl.u32 %v2065, 16
      %v2199 = vrot.slane %v2197, 7
      %v2200 = vshll.u32 %v2065, 16
      %v2202 = vor.u32 %v2199, %v2200
      %v2203 = vsel %vm2085, %v2195, %v2202
      %v2204 = vrot.slane %v2199, 4
      %v2206 = vshrl.u32 %v2066, 16
      %v2208 = vrot.slane %v2206, 7
      %v2209 = vshll.u32 %v2066, 16
      %v2211 = vor.u32 %v2208, %v2209
      %v2212 = vrot.slane %v2208, 4
      %v2214 = vshrl.u32 %v2067, 16
      %v2216 = vrot.slane %v2214, 7
      %v2217 = vshll.u32 %v2067, 16
      %v2219 = vor.u32 %v2216, %v2217
      %v2220 = vsel %vm2085, %v2212, %v2219
      %v2221 = vrot.slane %v2216, 4
      %v2223 = vshrl.u32 %v2068, 16
      %v2225 = vrot.slane %v2223, 7
      %v2226 = vshll.u32 %v2068, 16
      %v2228 = vor.u32 %v2225, %v2226
      %v2229 = vrot.slane %v2225, 4
      %v2231 = vshrl.u32 %v2069, 16
      %v2233 = vrot.slane %v2231, 7
      %v2234 = vshll.u32 %v2069, 16
      %v2236 = vor.u32 %v2233, %v2234
      %v2237 = vsel %vm2085, %v2229, %v2236
      %v2238 = vrot.slane %v2233, 4
      %v2240 = vshrl.u32 %v2070, 16
      %v2242 = vrot.slane %v2240, 7
      %v2243 = vshll.u32 %v2070, 16
      %v2245 = vor.u32 %v2242, %v2243
      %v2246 = vrot.slane %v2242, 4
      %v2248 = vshrl.u32 %v2071, 16
      %v2250 = vrot.slane %v2248, 7
      %v2251 = vshll.u32 %v2071, 16
      %v2253 = vor.u32 %v2250, %v2251
      %v2254 = vsel %vm2085, %v2246, %v2253
      %v2255 = vrot.slane %v2250, 4
      %v2257 = vshrl.u32 %v2072, 16
      %v2259 = vrot.slane %v2257, 7
      %v2260 = vshll.u32 %v2072, 16
      %v2262 = vor.u32 %v2259, %v2260
      %v2263 = vrot.slane %v2259, 4
      %v2265 = vshrl.u32 %v2073, 16
      %v2267 = vrot.slane %v2265, 7
      %v2268 = vshll.u32 %v2073, 16
      %v2270 = vor.u32 %v2267, %v2268
      %v2271 = vsel %vm2085, %v2263, %v2270
      %v2272 = vrot.slane %v2267, 4
      %v2274 = vshrl.u32 %v2074, 16
      %v2276 = vrot.slane %v2274, 7
      %v2277 = vshll.u32 %v2074, 16
      %v2279 = vor.u32 %v2276, %v2277
      %v2280 = vrot.slane %v2276, 4
      %v2282 = vshrl.u32 %v2075, 16
      %v2284 = vrot.slane %v2282, 7
      %v2285 = vshll.u32 %v2075, 16
      %v2287 = vor.u32 %v2284, %v2285
      %v2288 = vsel %vm2085, %v2280, %v2287
      %v2289 = vrot.slane %v2284, 4
      %v2291 = vshrl.u32 %v2076, 16
      %v2293 = vrot.slane %v2291, 7
      %v2294 = vshll.u32 %v2076, 16
      %v2296 = vor.u32 %v2293, %v2294
      %v2297 = vrot.slane %v2293, 4
      %v2299 = vshrl.u32 %v2077, 16
      %v2301 = vrot.slane %v2299, 7
      %v2302 = vshll.u32 %v2077, 16
      %v2304 = vor.u32 %v2301, %v2302
      %v2305 = vsel %vm2085, %v2297, %v2304
      %v2306 = vrot.slane %v2301, 4
      %v2308 = vshrl.u32 %v2078, 16
      %v2310 = vrot.slane %v2308, 7
      %v2311 = vshll.u32 %v2078, 16
      %v2313 = vor.u32 %v2310, %v2311
      %v2314 = vrot.slane %v2310, 4
      %v2316 = vshrl.u32 %v2079, 16
      %v2318 = vrot.slane %v2316, 7
      %v2319 = vshll.u32 %v2079, 16
      %v2321 = vor.u32 %v2318, %v2319
      %v2322 = vsel %vm2085, %v2314, %v2321
      %v2323 = vrot.slane %v2318, 4
      %v2325 = vshrl.u32 %v2080, 16
      %v2327 = vrot.slane %v2325, 7
      %v2328 = vshll.u32 %v2080, 16
      %v2330 = vor.u32 %v2327, %v2328
      %v2331 = vrot.slane %v2327, 4
      %v2333 = vshrl.u32 %v2081, 16
      %v2335 = vrot.slane %v2333, 7
      %v2336 = vshll.u32 %v2081, 16
      %v2338 = vor.u32 %v2335, %v2336
      %v2339 = vsel %vm2085, %v2331, %v2338
      %v2340 = vrot.slane %v2335, 4
      %v2342 = vshrl.u32 %v2082, 16
      %v2344 = vrot.slane %v2342, 7
      %v2345 = vshll.u32 %v2082, 16
      %v2347 = vor.u32 %v2344, %v2345
      %v2348 = vrot.slane %v2344, 4
      %v2350 = vshrl.u32 %v2083, 16
      %v2352 = vrot.slane %v2350, 7
      %v2353 = vshll.u32 %v2083, 16
      %v2355 = vor.u32 %v2352, %v2353
      %v2356 = vsel %vm2085, %v2348, %v2355
      %v2357 = vrot.slane %v2352, 4
      %s2406 = scalar_lea.vmem %s291, 12
      %vm2407 = vcmask 60416
      %vm2408 = vmand %vm2407, %vm608
      %v2409 = vld [vmem:[%s2406] sm:$0xf]
      %v2410 = vsel %vm2408, %v2092, %v2409
      %2411 = vst [vmem:[%s2406] sm:$0xf] %v2410
      %2412 = vst.msk [vmem:[%s2406 + $0x4] sm:$0xf] %vm1996, %v2101
      %vm2413 = vcmask 57344
      %vm2414 = vmand %vm2413, %vm615
      %v2415 = vld [vmem:[%s2406 + $0x8] sm:$0x1]
      %v2416 = vsel %vm2414, %v2102, %v2415
      %2417 = vst [vmem:[%s2406 + $0x8] sm:$0x1] %v2416
      %v2418 = vld [vmem:[%s2406 + $0xc] sm:$0xf]
      %v2419 = vsel %vm2408, %v2109, %v2418
      %2420 = vst [vmem:[%s2406 + $0xc] sm:$0xf] %v2419
      %2421 = vst.msk [vmem:[%s2406 + $0x10] sm:$0xf] %vm1996, %v2118
      %v2422 = vld [vmem:[%s2406 + $0x14] sm:$0x1]
      %v2423 = vsel %vm2414, %v2119, %v2422
      %2424 = vst [vmem:[%s2406 + $0x14] sm:$0x1] %v2423
      %v2425 = vld [vmem:[%s2406 + $0x18] sm:$0xf]
      %v2426 = vsel %vm2408, %v2126, %v2425
      %2427 = vst [vmem:[%s2406 + $0x18] sm:$0xf] %v2426
      %2428 = vst.msk [vmem:[%s2406 + $0x1c] sm:$0xf] %vm1996, %v2135
      %v2429 = vld [vmem:[%s2406 + $0x20] sm:$0x1]
      %v2430 = vsel %vm2414, %v2136, %v2429
      %2431 = vst [vmem:[%s2406 + $0x20] sm:$0x1] %v2430
      %v2432 = vld [vmem:[%s2406 + $0x24] sm:$0xf]
      %v2433 = vsel %vm2408, %v2143, %v2432
      %2434 = vst [vmem:[%s2406 + $0x24] sm:$0xf] %v2433
      %2435 = vst.msk [vmem:[%s2406 + $0x28] sm:$0xf] %vm1996, %v2152
      %v2436 = vld [vmem:[%s2406 + $0x2c] sm:$0x1]
      %v2437 = vsel %vm2414, %v2153, %v2436
      %2438 = vst [vmem:[%s2406 + $0x2c] sm:$0x1] %v2437
      %v2439 = vld [vmem:[%s2406 + $0x30] sm:$0xf]
      %v2440 = vsel %vm2408, %v2160, %v2439
      %2441 = vst [vmem:[%s2406 + $0x30] sm:$0xf] %v2440
      %2442 = vst.msk [vmem:[%s2406 + $0x34] sm:$0xf] %vm1996, %v2169
      %v2443 = vld [vmem:[%s2406 + $0x38] sm:$0x1]
      %v2444 = vsel %vm2414, %v2170, %v2443
      %2445 = vst [vmem:[%s2406 + $0x38] sm:$0x1] %v2444
      %v2446 = vld [vmem:[%s2406 + $0x3c] sm:$0xf]
      %v2447 = vsel %vm2408, %v2177, %v2446
      %2448 = vst [vmem:[%s2406 + $0x3c] sm:$0xf] %v2447
      %2449 = vst.msk [vmem:[%s2406 + $0x40] sm:$0xf] %vm1996, %v2186
      %v2450 = vld [vmem:[%s2406 + $0x44] sm:$0x1]
      %v2451 = vsel %vm2414, %v2187, %v2450
      %2452 = vst [vmem:[%s2406 + $0x44] sm:$0x1] %v2451
      %v2453 = vld [vmem:[%s2406 + $0x48] sm:$0xf]
      %v2454 = vsel %vm2408, %v2194, %v2453
      %2455 = vst [vmem:[%s2406 + $0x48] sm:$0xf] %v2454
      %2456 = vst.msk [vmem:[%s2406 + $0x4c] sm:$0xf] %vm1996, %v2203
      %v2457 = vld [vmem:[%s2406 + $0x50] sm:$0x1]
      %v2458 = vsel %vm2414, %v2204, %v2457
      %2459 = vst [vmem:[%s2406 + $0x50] sm:$0x1] %v2458
      %v2460 = vld [vmem:[%s2406 + $0x54] sm:$0xf]
      %v2461 = vsel %vm2408, %v2211, %v2460
      %2462 = vst [vmem:[%s2406 + $0x54] sm:$0xf] %v2461
      %2463 = vst.msk [vmem:[%s2406 + $0x58] sm:$0xf] %vm1996, %v2220
      %v2464 = vld [vmem:[%s2406 + $0x5c] sm:$0x1]
      %v2465 = vsel %vm2414, %v2221, %v2464
      %2466 = vst [vmem:[%s2406 + $0x5c] sm:$0x1] %v2465
      %v2467 = vld [vmem:[%s2406 + $0x60] sm:$0xf]
      %v2468 = vsel %vm2408, %v2228, %v2467
      %2469 = vst [vmem:[%s2406 + $0x60] sm:$0xf] %v2468
      %2470 = vst.msk [vmem:[%s2406 + $0x64] sm:$0xf] %vm1996, %v2237
      %v2471 = vld [vmem:[%s2406 + $0x68] sm:$0x1]
      %v2472 = vsel %vm2414, %v2238, %v2471
      %2473 = vst [vmem:[%s2406 + $0x68] sm:$0x1] %v2472
      %v2474 = vld [vmem:[%s2406 + $0x6c] sm:$0xf]
      %v2475 = vsel %vm2408, %v2245, %v2474
      %2476 = vst [vmem:[%s2406 + $0x6c] sm:$0xf] %v2475
      %2477 = vst.msk [vmem:[%s2406 + $0x70] sm:$0xf] %vm1996, %v2254
      %v2478 = vld [vmem:[%s2406 + $0x74] sm:$0x1]
      %v2479 = vsel %vm2414, %v2255, %v2478
      %2480 = vst [vmem:[%s2406 + $0x74] sm:$0x1] %v2479
      %v2481 = vld [vmem:[%s2406 + $0x78] sm:$0xf]
      %v2482 = vsel %vm2408, %v2262, %v2481
      %2483 = vst [vmem:[%s2406 + $0x78] sm:$0xf] %v2482
      %2484 = vst.msk [vmem:[%s2406 + $0x7c] sm:$0xf] %vm1996, %v2271
      %v2485 = vld [vmem:[%s2406 + $0x80] sm:$0x1]
      %v2486 = vsel %vm2414, %v2272, %v2485
      %2487 = vst [vmem:[%s2406 + $0x80] sm:$0x1] %v2486
      %v2488 = vld [vmem:[%s2406 + $0x84] sm:$0xf]
      %v2489 = vsel %vm2408, %v2279, %v2488
      %2490 = vst [vmem:[%s2406 + $0x84] sm:$0xf] %v2489
      %2491 = vst.msk [vmem:[%s2406 + $0x88] sm:$0xf] %vm1996, %v2288
      %v2492 = vld [vmem:[%s2406 + $0x8c] sm:$0x1]
      %v2493 = vsel %vm2414, %v2289, %v2492
      %2494 = vst [vmem:[%s2406 + $0x8c] sm:$0x1] %v2493
      %v2495 = vld [vmem:[%s2406 + $0x90] sm:$0xf]
      %v2496 = vsel %vm2408, %v2296, %v2495
      %2497 = vst [vmem:[%s2406 + $0x90] sm:$0xf] %v2496
      %2498 = vst.msk [vmem:[%s2406 + $0x94] sm:$0xf] %vm1996, %v2305
      %v2499 = vld [vmem:[%s2406 + $0x98] sm:$0x1]
      %v2500 = vsel %vm2414, %v2306, %v2499
      %2501 = vst [vmem:[%s2406 + $0x98] sm:$0x1] %v2500
      %v2502 = vld [vmem:[%s2406 + $0x9c] sm:$0xf]
      %v2503 = vsel %vm2408, %v2313, %v2502
      %2504 = vst [vmem:[%s2406 + $0x9c] sm:$0xf] %v2503
      %2505 = vst.msk [vmem:[%s2406 + $0xa0] sm:$0xf] %vm1996, %v2322
      %v2506 = vld [vmem:[%s2406 + $0xa4] sm:$0x1]
      %v2507 = vsel %vm2414, %v2323, %v2506
      %2508 = vst [vmem:[%s2406 + $0xa4] sm:$0x1] %v2507
      %v2509 = vld [vmem:[%s2406 + $0xa8] sm:$0xf]
      %v2510 = vsel %vm2408, %v2330, %v2509
      %2511 = vst [vmem:[%s2406 + $0xa8] sm:$0xf] %v2510
      %2512 = vst.msk [vmem:[%s2406 + $0xac] sm:$0xf] %vm1996, %v2339
      %v2513 = vld [vmem:[%s2406 + $0xb0] sm:$0x1]
      %v2514 = vsel %vm2414, %v2340, %v2513
      %2515 = vst [vmem:[%s2406 + $0xb0] sm:$0x1] %v2514
      %v2516 = vld [vmem:[%s2406 + $0xb4] sm:$0xf]
      %v2517 = vsel %vm2408, %v2347, %v2516
      %2518 = vst [vmem:[%s2406 + $0xb4] sm:$0xf] %v2517
      %2519 = vst.msk [vmem:[%s2406 + $0xb8] sm:$0xf] %vm1996, %v2356
      %v2520 = vld [vmem:[%s2406 + $0xbc] sm:$0x1]
      %v2521 = vsel %vm2414, %v2357, %v2520
      %2522 = vst [vmem:[%s2406 + $0xbc] sm:$0x1] %v2521
      %p2523 = scmp.lt.s32.totalorder %s19, 1
      %s2524 = scalar_select %p2523, %s19, 1
      %s2525 = smul.addr %s2524, 54
      %s2526 = smul.addr %s2525, 4
      %s2527 = scalar_lea.vmem %s5, %s2526
      %p2528 = scmp.lt.s32.totalorder %s19, 1
      %s2529 = scalar_select %p2528, %s19, 1
      %s2530 = smul.addr %s2529, 8
      %s2531 = scalar_lea.vmem %s6, %s2530
      %p2532 = scmp.lt.s32.totalorder %s19, 1
      %s2533 = scalar_select %p2532, %s19, 1
      %s2534 = smul.addr %s2533, 8
      %s2535 = scalar_lea.vmem %s7, %s2534
      // Predicated region
      $region41: #{tpu_custom_call.1} parent=39 // pred_check
        %p2536 = pneg %p147
      $region42: #{tpu_custom_call.1} parent=39 // pred_check_branch
        %2538 = sbr.rel (%p2536) target = $region44
      $region43: #{tpu_custom_call.1} parent=39 // pred_region
        _
      $region44: #{tpu_custom_call.1} parent=39 // pred_fallthru
        _
      // Predicated region
      $region45: #{tpu_custom_call.1} parent=39 // pred_check
        %p2539 = pneg %p173
      $region46: #{tpu_custom_call.1} parent=39 // pred_check_branch
        %2541 = sbr.rel (%p2539) target = $region48
      $region47: #{tpu_custom_call.1} parent=39 // pred_region
        _
      $region48: #{tpu_custom_call.1} parent=39 // pred_fallthru
        _
      // Predicated region
      $region49: #{tpu_custom_call.1} parent=39 // pred_check
        %p2542 = pneg %p199
      $region50: #{tpu_custom_call.1} parent=39 // pred_check_branch
        %2544 = sbr.rel (%p2542) target = $region52
      $region51: #{tpu_custom_call.1} parent=39 // pred_region
        _
      $region52: #{tpu_custom_call.1} parent=39 // pred_fallthru
        _
    $region40: #{tpu_custom_call.1} parent=5 // pred_fallthru
      _
    %p2545 = scmp.le.s32.totalorder 2, %s14
    // Predicated region
    $region53: #{tpu_custom_call.1} parent=5 // pred_check
      %p2546 = pneg %p2545
    $region54: #{tpu_custom_call.1} parent=5 // pred_check_branch
      %2548 = sbr.rel (%p2546) target = $region56
    $region55: #{tpu_custom_call.1} parent=5 // pred_region
      %s2549 = ssub.s32 %s14, 2
      // Predicated region
      $region57: #{tpu_custom_call.1} parent=55 // pred_check
        %p2550 = pneg %p153
      $region58: #{tpu_custom_call.1} parent=55 // pred_check_branch
        %2552 = sbr.rel (%p2550) target = $region60
      $region59: #{tpu_custom_call.1} parent=55 // pred_region
        %p2553 = scmp.lt.s32.totalorder %s20, 1
        %s2554 = scalar_select %p2553, %s20, 1
        %s2555 = smul.addr %s2554, 54
        %s2556 = smul.addr %s2555, 4
        %s2557 = scalar_lea.vmem %s5, %s2556
      $region60: #{tpu_custom_call.1} parent=55 // pred_fallthru
        _
      // Predicated region
      $region61: #{tpu_custom_call.1} parent=55 // pred_check
        %p2558 = pneg %p179
      $region62: #{tpu_custom_call.1} parent=55 // pred_check_branch
        %2560 = sbr.rel (%p2558) target = $region64
      $region63: #{tpu_custom_call.1} parent=55 // pred_region
        %p2561 = scmp.lt.s32.totalorder %s20, 1
        %s2562 = scalar_select %p2561, %s20, 1
        %s2563 = smul.addr %s2562, 8
        %s2564 = scalar_lea.vmem %s6, %s2563
      $region64: #{tpu_custom_call.1} parent=55 // pred_fallthru
        _
      // Predicated region
      $region65: #{tpu_custom_call.1} parent=55 // pred_check
        %p2565 = pneg %p205
      $region66: #{tpu_custom_call.1} parent=55 // pred_check_branch
        %2567 = sbr.rel (%p2565) target = $region68
      $region67: #{tpu_custom_call.1} parent=55 // pred_region
        %p2568 = scmp.lt.s32.totalorder %s20, 1
        %s2569 = scalar_select %p2568, %s20, 1
        %s2570 = smul.addr %s2569, 8
        %s2571 = scalar_lea.vmem %s7, %s2570
      $region68: #{tpu_custom_call.1} parent=55 // pred_fallthru
        _
    $region56: #{tpu_custom_call.1} parent=5 // pred_fallthru
      _
  $region6: #{tpu_custom_call.1} parent=0 // loop_footer
    %s18 = sadd.s32 1, %s14
  $region7: #{tpu_custom_call.1} parent=0 // loop_footer_branch
    %13 = sbr.rel target = $region3
  $region8: #{tpu_custom_call.1} parent=0 // loop_exit
    _

</llo_original>
